<compile_context>
chip_gen: v6e
topology: v6e:2x2x1
jax: 0.10.0
libtpu: 0.0.40
codegen_flags: <defaults>
</compile_context>

<pallas_src>
from functools import partial

import jax
import jax.numpy as jnp
from jax import lax
from jax.experimental import pallas as pl
from jax.experimental.pallas import tpu as pltpu


# ----------------------------------------------------------------------------
# helpers
# ----------------------------------------------------------------------------
def _gelu(x):
    # tanh-approx GELU (EUP-friendly).
    # TODO(synk): Activation() not given; PyTorch nn.GELU defaults to erf form.
    c = 0.7978845608028654  # sqrt(2/pi)
    return 0.5 * x * (1.0 + jnp.tanh(c * (x + 0.044715 * x * x * x)))


def _elementwise_dtype():
    """bf16 elementwise math on chips with a bf16 VPU/EUP (v6e/v7x), else f32."""
    try:
        kind = jax.devices()[0].device_kind.lower()
    except Exception:
        return jnp.float32
    if ("v6" in kind) or ("v7" in kind) or ("trillium" in kind):
        return jnp.bfloat16
    return jnp.float32


def _vmem_capacity_bytes():
    """Physical VMEM of the attached TPU (generation-aware budget source).
    Falls back to the v7x-safe 64 MiB if the query is unavailable."""
    try:
        return int(pltpu.get_tpu_info().vmem_capacity_bytes)
    except Exception:
        return 64 << 20


def _pick_token_tile(hw, per_token_bytes, budget_bytes):
    """Largest token tile that divides hw, is a multiple of 128 (lane-dense
    stores, aligned blocks) and fits the generation-aware VMEM budget."""
    if hw <= 128:
        return hw
    cap = max(128, budget_bytes // max(int(per_token_bytes), 1))
    if hw <= cap and hw % 128 == 0:
        return hw
    t = (min(cap, hw) // 128) * 128
    while t >= 128:
        if hw % t == 0:
            return t
        t -= 128
    # TODO(synk): pad hw to a multiple of 128 instead of one full-array block.
    return hw


def _resize_matrix(n_out, n_in):
    """1-D bilinear interpolation matrix matching torch F.interpolate
    (mode='bilinear', align_corners=False): out = M @ in, M: (n_out, n_in)."""
    scale = n_in / n_out
    dst = jnp.arange(n_out, dtype=jnp.float32)
    src = jnp.clip((dst + 0.5) * scale - 0.5, 0.0, n_in - 1.0)
    i0 = jnp.floor(src)
    w1 = src - i0
    i0 = i0.astype(jnp.int32)
    i1 = jnp.minimum(i0 + 1, n_in - 1)
    cols = jnp.arange(n_in, dtype=jnp.int32)[None, :]
    m = ((1.0 - w1)[:, None] * (cols == i0[:, None])
         + w1[:, None] * (cols == i1[:, None]))
    return m.astype(jnp.float32)


def make_base_locations_flat(h, w):
    """Identity sampling grid at pixel centers (align_corners=False),
    shape (2, h*w); row 0 = x, row 1 = y.
    TODO(synk): original make_base_locations not provided; identity assumed."""
    xs = (2.0 * jnp.arange(w, dtype=jnp.float32) + 1.0) / w - 1.0
    ys = (2.0 * jnp.arange(h, dtype=jnp.float32) + 1.0) / h - 1.0
    bx = jnp.tile(xs[None, :], (h, 1)).reshape(1, h * w)
    by = jnp.tile(ys[:, None], (1, w)).reshape(1, h * w)
    return jnp.concatenate([bx, by], axis=0)


# ----------------------------------------------------------------------------
# Pallas kernel 1: image_encoder (once per batch, image resolution)
# ----------------------------------------------------------------------------
def _img_encoder_kernel(img_ref, w_ref, b_ref, o_ref):
    # enc = GELU(W_ie^T @ img + b), channels-on-sublanes layout.
    y = jnp.dot(w_ref[...], img_ref[0].astype(w_ref.dtype),
                preferred_element_type=jnp.float32)
    o_ref[0] = _gelu(y + b_ref[...]).astype(o_ref.dtype)


def encode_image(image_cl, w_ie_t, b_ie):
    n, ci, hwi = image_cl.shape
    f_dim = w_ie_t.shape[0]
    return pl.pallas_call(
        _img_encoder_kernel,
        out_shape=jax.ShapeDtypeStruct((n, f_dim, hwi), jnp.float32),
        grid=(n,),
        in_specs=[
            pl.BlockSpec((1, ci, hwi), lambda b: (b, 0, 0)),
            pl.BlockSpec((f_dim, ci), lambda b: (0, 0)),
            pl.BlockSpec((f_dim, 1), lambda b: (0, 0)),
        ],
        out_specs=pl.BlockSpec((1, f_dim, hwi), lambda b: (b, 0, 0)),
        compiler_params=pltpu.CompilerParams(
            dimension_semantics=("parallel",)),
    )(image_cl, w_ie_t, b_ie)


# ----------------------------------------------------------------------------
# Pallas kernel 2: fused feature_encoder + ConvolutionalStage + deformer +
#                  base grid + grid_sample (bilinear, border, no align_corners)
# ----------------------------------------------------------------------------
def _stage_kernel(ftile_ref, fall_ref, imgr_ref, base_ref,
                  wfe_ref, wt1_ref, wt2_ref,
                  wd1_ref, wd2_ref, wd3_ref, wd4_ref,
                  bias_ref, bd4_ref, o_ref, *, ew, mm, fh, fw):
    tm = base_ref.shape[-1]

    def dense(w_ref, x, bcol, act):
        # 1x1 conv as W^T @ x (channels on sublanes, tokens on lanes);
        # bf16 operands, f32 MXU accumulation, bias broadcast over lanes.
        fo = w_ref.shape[0]
        y = jnp.dot(w_ref[...], x.astype(w_ref.dtype),
                    preferred_element_type=jnp.float32)
        y = (y + bias_ref[0:fo, bcol:bcol + 1]).astype(ew)
        return _gelu(y) if act else y

    # feature_encoder (ProjectionLayer: 1x1 conv + GELU).
    f = dense(wfe_ref, ftile_ref[0], 0, act=True)                 # (F, tm)

    # TODO(synk): ConvolutionalStage definition not provided; modelled as
    # image-fusion + two 1x1 convs with a residual.
    x = f + imgr_ref[0].astype(ew)
    h = dense(wt1_ref, x, 1, act=True)
    t = dense(wt2_ref, h, 2, act=False) + f

    # deformer MLP: F -> F/2 -> F/4 -> F/8 -> 2 (all 1x1 convs).
    # NOTE(synk): for production F not a multiple of 128 the tail matmuls are
    # heavily lane-padded on the MXU; pad F at the parameter level if needed.
    d = dense(wd1_ref, t, 3, act=True)
    d = dense(wd2_ref, d, 4, act=True)
    d = dense(wd3_ref, d, 5, act=True)
    fld = jnp.dot(wd4_ref[...], d.astype(wd4_ref.dtype),
                  preferred_element_type=jnp.float32)
    fld = fld + bd4_ref[...] + base_ref[...]                      # (2, tm) f32

    # ---- fused grid_sample(bilinear, padding_mode='border',
    #      align_corners=False); gather-free, MXU-applied. -------------------
    fx = fld[0:1, :]                                              # x in [-1, 1]
    fy = fld[1:2, :]
    ix = jnp.clip((fx + 1.0) * (0.5 * fw) - 0.5, 0.0, fw - 1.0)   # border clip
    iy = jnp.clip((fy + 1.0) * (0.5 * fh) - 0.5, 0.0, fh - 1.0)
    x0 = jnp.floor(ix)
    y0 = jnp.floor(iy)
    wx1 = ix - x0
    wy1 = iy - y0
    x0i = x0.astype(jnp.int32)
    y0i = y0.astype(jnp.int32)
    x1i = jnp.minimum(x0i + 1, fw - 1)
    y1i = jnp.minimum(y0i + 1, fh - 1)

    # Separable tap weights on the small (fw, tm)/(fh, tm) grids (2 compares
    # each), then a single outer-product multiply builds the (HW, tm) bilinear
    # sampling matrix -- ~10x fewer VPU ops than a direct (HW, tm) one-hot.
    colx = lax.broadcasted_iota(jnp.int32, (fw, tm), 0)
    rowy = lax.broadcasted_iota(jnp.int32, (fh, tm), 0)
    wxm = (jnp.where(colx == x0i, 1.0 - wx1, 0.0)
           + jnp.where(colx == x1i, wx1, 0.0))                    # (fw, tm)
    wym = (jnp.where(rowy == y0i, 1.0 - wy1, 0.0)
           + jnp.where(rowy == y1i, wy1, 0.0))                    # (fh, tm)
    samp = (wym[:, None, :] * wxm[None, :, :]).reshape(fh * fw, tm)

    # out[c, p] = sum_q feat[c, q] * samp[q, p]  -- bf16 MXU, f32 accumulation.
    o_ref[0] = jnp.dot(fall_ref[0].astype(mm), samp.astype(mm),
                       preferred_element_type=jnp.float32).astype(o_ref.dtype)


def fused_stage_and_sample(feat_mm, img_rs, base, p, fh, fw, *,
                           mm_dtype, ew_dtype, vmem_cap):
    n, cf, hw = feat_mm.shape
    f_dim = img_rs.shape[1]
    feat_bytes = jnp.dtype(feat_mm.dtype).itemsize

    # Weights pre-transposed for left-multiplies (channels-first layout).
    wfe = p["w_fe"].T.astype(mm_dtype)             # (F, cf)
    wt1 = p["w_t1"].T.astype(mm_dtype)             # (F, F)
    wt2 = p["w_t2"].T.astype(mm_dtype)             # (F, F)
    wd1 = p["w_d1"].T.astype(mm_dtype)             # (F/2, F)
    wd2 = p["w_d2"].T.astype(mm_dtype)             # (F/4, F/2)
    wd3 = p["w_d3"].T.astype(mm_dtype)             # (F/8, F/4)
    wd4 = p["w_d4"].T.astype(mm_dtype)             # (2, F/8)

    # Biases packed as columns of one (F, 6) slab (single small DMA).
    def pad_col(b):
        return jnp.pad(b, (0, f_dim - b.shape[0]))[:, None]

    bias = jnp.concatenate(
        [pad_col(p[k]) for k in ("b_fe", "b_t1", "b_t2", "b_d1", "b_d2", "b_d3")],
        axis=1).astype(jnp.float32)                # (F, 6)
    bd4 = p["b_d4"].reshape(2, 1).astype(jnp.float32)

    # ---- generation-aware token tile (feedback: don't leave VMEM idle) ----
    ew_b = 2 if ew_dtype == jnp.bfloat16 else 4
    per_tok = (2 * (cf * feat_bytes        # feature tile (double-buffered)
                    + f_dim * 2            # resized encoded image tile (bf16)
                    + 2 * 4                # base-grid tile
                    + cf * 4)              # output tile
               + 10 * hw                   # sampling-matrix build temporaries
               + 6 * f_dim * ew_b)         # dense-chain activation temporaries
    weight_bytes = 2 * sum(int(w.size) * 2 for w in
                           (wfe, wt1, wt2, wd1, wd2, wd3, wd4))
    fixed = 2 * cf * hw * feat_bytes + weight_bytes + (1 << 20)
    budget = max(int(vmem_cap * 0.6) - fixed, 2 << 20)
    tm = _pick_token_tile(hw, per_tok, budget)
    grid = (n, hw // tm)

    weights = [wfe, wt1, wt2, wd1, wd2, wd3, wd4]
    # NOTE(synk): grid-invariant operands (weights/biases/feature slab) could
    # be single-buffered (pipeline_mode buffering hint) to reclaim VMEM at
    # large F; left default-buffered here for lowering robustness.
    w_specs = [pl.BlockSpec(tuple(w.shape), lambda b, t: (0, 0)) for w in weights]

    in_specs = ([
        pl.BlockSpec((1, cf, tm), lambda b, t: (b, 0, t)),     # feature tile
        pl.BlockSpec((1, cf, hw), lambda b, t: (b, 0, 0)),     # feature slab (resample src)
        pl.BlockSpec((1, f_dim, tm), lambda b, t: (b, 0, t)),  # encoded+resized image tile
        pl.BlockSpec((2, tm), lambda b, t: (0, t)),            # base grid tile
    ] + w_specs + [
        pl.BlockSpec((f_dim, 6), lambda b, t: (0, 0)),         # packed biases
        pl.BlockSpec((2, 1), lambda b, t: (0, 0)),             # last-layer bias
    ])

    return pl.pallas_call(
        partial(_stage_kernel, ew=ew_dtype, mm=mm_dtype, fh=fh, fw=fw),
        out_shape=jax.ShapeDtypeStruct((n, cf, hw), jnp.float32),
        grid=grid,
        in_specs=in_specs,
        out_specs=pl.BlockSpec((1, cf, tm), lambda b, t: (b, 0, t)),
        compiler_params=pltpu.CompilerParams(
            dimension_semantics=("parallel", "parallel"),
            vmem_limit_bytes=int(vmem_cap * 0.8)),
    )(feat_mm, feat_mm, img_rs, base, *weights, bias, bd4)


# ----------------------------------------------------------------------------
# full forward
# ----------------------------------------------------------------------------
def pixelvit_stage_forward(p, features, image, *, ew_dtype=None,
                           mm_dtype=jnp.bfloat16):
    n, cf, hf, wf = features.shape
    _, ci, hi, wi = image.shape
    hw, hwi = hf * wf, hi * wi
    f_dim = p["w_ie"].shape[1]
    if ew_dtype is None:
        ew_dtype = _elementwise_dtype()
    vmem_cap = _vmem_capacity_bytes()

    # --- image branch: encode once per batch (Pallas), then separable bilinear
    #     resize to feature resolution (tiny one-off precompute; replaces the
    #     per-token-tile Kronecker resize matmul of the previous version). ---
    image_cl = image.reshape(n, ci, hwi)                     # free NCHW reshape
    w_ie_t = p["w_ie"].T.astype(mm_dtype)                    # (F, ci)
    b_ie = p["b_ie"].astype(jnp.float32)[:, None]            # (F, 1)
    enc = encode_image(image_cl, w_ie_t, b_ie)               # (N, F, HWi) f32

    ry = _resize_matrix(hf, hi)                              # (hf, hi)
    rx = _resize_matrix(wf, wi)                              # (wf, wi)
    enc4 = enc.reshape(n, f_dim, hi, wi)
    tmp = jnp.einsum("oy,ncyx->ncox", ry, enc4)              # y-resize
    img_rs = jnp.einsum("px,ncyx->ncyp", rx, tmp)            # x-resize
    img_rs = img_rs.reshape(n, f_dim, hw).astype(mm_dtype)   # (N, F, HW) bf16

    # --- fused stage + grid_sample kernel (channels-first, free reshapes). ---
    feat_mm = features.reshape(n, cf, hw).astype(mm_dtype)
    base = make_base_locations_flat(hf, wf)                  # (2, HW) f32

    out_flat = fused_stage_and_sample(feat_mm, img_rs, base, p, hf, wf,
                                      mm_dtype=mm_dtype, ew_dtype=ew_dtype,
                                      vmem_cap=vmem_cap)
    return out_flat.reshape(n, cf, hf, wf)


# ----------------------------------------------------------------------------
# deterministic parameter init (synthetic, not a checkpoint)
# ----------------------------------------------------------------------------
def init_params(seed, n_features, n_features_in, n_image_features):
    f_dim = n_features
    keys = iter(jax.random.split(jax.random.PRNGKey(seed), 24))

    def w(cin, cout, std=0.05):
        return (std * jax.random.normal(next(keys), (cin, cout))).astype(jnp.float32)

    def b(c, std=0.01):
        return (std * jax.random.normal(next(keys), (c,))).astype(jnp.float32)

    return dict(
        w_ie=w(n_image_features, f_dim), b_ie=b(f_dim),
        w_fe=w(n_features_in, f_dim), b_fe=b(f_dim),
        w_t1=w(f_dim, f_dim), b_t1=b(f_dim),
        w_t2=w(f_dim, f_dim), b_t2=b(f_dim),
        w_d1=w(f_dim, f_dim // 2), b_d1=b(f_dim // 2),
        w_d2=w(f_dim // 2, f_dim // 4), b_d2=b(f_dim // 4),
        w_d3=w(f_dim // 4, f_dim // 8), b_d3=b(f_dim // 8),
        # last deformer layer: normal(std=0.01), zero bias (per module __init__)
        w_d4=w(f_dim // 8, 2, std=0.01), b_d4=jnp.zeros((2,), jnp.float32),
    )


if __name__ == "__main__":
    N_FEATURES = 32
    N_FEATURES_IN = 4
    N_IMAGE_FEATURES = 4

    params = init_params(0, N_FEATURES, N_FEATURES_IN, N_IMAGE_FEATURES)

    key = jax.random.PRNGKey(0)
    k1, k2 = jax.random.split(key)
    features = jax.random.normal(k1, (2, N_FEATURES_IN, 16, 16), dtype=jnp.float32)
    image = jax.random.normal(k2, (2, N_IMAGE_FEATURES, 8, 8), dtype=jnp.float32)

    out = jax.jit(pixelvit_stage_forward)(params, features, image)
    out = jax.block_until_ready(out)
    assert out.shape == features.shape and out.dtype == jnp.float32
    assert bool(jnp.all(jnp.isfinite(out)))
    print("KERNEL_OK")
</pallas_src>

<mosaic_0001>
module attributes {stable_mosaic.version = 11 : i64} {
  func.func @_img_encoder_kernel(%arg0: i32, %arg1: memref<1x4x64xf32, #tpu.memory_space<vmem>>, %arg2: memref<32x4xbf16, #tpu.memory_space<vmem>>, %arg3: memref<32x1xf32, #tpu.memory_space<vmem>>, %arg4: memref<1x32x64xf32, #tpu.memory_space<vmem>>) attributes {dimension_semantics = [#tpu.dimension_semantics<parallel>], iteration_bounds = array<i64: 2>, scalar_prefetch = 0 : i64, scratch_operands = 0 : i64, tpu.core_type = #tpu.core_type<tc>, window_params = [{transform_indices = @transform_0, window_bounds = array<i64: 1, 4, 64>}, {pipeline_mode = #tpu.pipeline_mode<synchronous>, transform_indices = @transform_1, window_bounds = array<i64: 32, 4>}, {pipeline_mode = #tpu.pipeline_mode<synchronous>, transform_indices = @transform_2, window_bounds = array<i64: 32, 1>}, {transform_indices = @transform_3, window_bounds = array<i64: 1, 32, 64>}]} {
    %c0 = arith.constant 0 : index
    %c0_0 = arith.constant 0 : index
    %0 = vector.load %arg2[%c0, %c0_0] : memref<32x4xbf16, #tpu.memory_space<vmem>>, vector<32x4xbf16>
    %c0_1 = arith.constant 0 : index
    %c0_2 = arith.constant 0 : index
    %c0_3 = arith.constant 0 : index
    %1 = vector.load %arg1[%c0_1, %c0_2, %c0_3] : memref<1x4x64xf32, #tpu.memory_space<vmem>>, vector<1x4x64xf32>
    %2 = vector.shape_cast %1 : vector<1x4x64xf32> to vector<4x64xf32>
    %3 = arith.truncf %2 : vector<4x64xf32> to vector<4x64xbf16>
    %cst = arith.constant dense<0.000000e+00> : vector<32x64xf32>
    %4 = tpu.matmul %0, %3, %cst {dimension_numbers = #tpu.dot_dimension_numbers<[1], [0], [0], [1], [0, 0, 1, 1], [], []>} : vector<32x4xbf16>, vector<4x64xbf16>, vector<32x64xf32> -> vector<32x64xf32>
    %c0_4 = arith.constant 0 : index
    %c0_5 = arith.constant 0 : index
    %5 = vector.load %arg3[%c0_4, %c0_5] : memref<32x1xf32, #tpu.memory_space<vmem>>, vector<32x1xf32>
    %6 = vector.broadcast %5 : vector<32x1xf32> to vector<32x64xf32>
    %7 = arith.addf %4, %6 : vector<32x64xf32>
    %cst_6 = arith.constant 5.000000e-01 : f32
    %8 = vector.broadcast %cst_6 : f32 to vector<32x64xf32>
    %9 = arith.mulf %8, %7 : vector<32x64xf32>
    %cst_7 = arith.constant 4.471500e-02 : f32
    %10 = vector.broadcast %cst_7 : f32 to vector<32x64xf32>
    %11 = arith.mulf %10, %7 : vector<32x64xf32>
    %12 = arith.mulf %11, %7 : vector<32x64xf32>
    %13 = arith.mulf %12, %7 : vector<32x64xf32>
    %14 = arith.addf %7, %13 : vector<32x64xf32>
    %cst_8 = arith.constant 0.797884583 : f32
    %15 = vector.broadcast %cst_8 : f32 to vector<32x64xf32>
    %16 = arith.mulf %15, %14 : vector<32x64xf32>
    %17 = math.tanh %16 : vector<32x64xf32>
    %cst_9 = arith.constant 1.000000e+00 : f32
    %18 = vector.broadcast %cst_9 : f32 to vector<32x64xf32>
    %19 = arith.addf %18, %17 : vector<32x64xf32>
    %20 = arith.mulf %9, %19 : vector<32x64xf32>
    %c0_10 = arith.constant 0 : index
    %c0_11 = arith.constant 0 : index
    %c0_12 = arith.constant 0 : index
    %21 = vector.load %arg4[%c0_10, %c0_11, %c0_12] : memref<1x32x64xf32, #tpu.memory_space<vmem>>, vector<1x32x64xf32>
    %22 = vector.shape_cast %21 : vector<1x32x64xf32> to vector<32x64xf32>
    %23 = vector.shape_cast %20 : vector<32x64xf32> to vector<1x32x64xf32>
    tpu.vector_store %arg4[%c0_10, %c0_11, %c0_12], %23 {strides = array<i32>} : memref<1x32x64xf32, #tpu.memory_space<vmem>>, vector<1x32x64xf32>,
    return
  }
  func.func @transform_0(%arg0: i32) -> (i32, i32, i32) {
    %c0_i32 = arith.constant 0 : i32
    %c0_i32_0 = arith.constant 0 : i32
    %c0_i32_1 = arith.constant 0 : i32
    return %arg0, %c0_i32, %c0_i32_0 : i32, i32, i32
  }
  func.func @transform_1(%arg0: i32) -> (i32, i32) {
    %c0_i32 = arith.constant 0 : i32
    %c0_i32_0 = arith.constant 0 : i32
    %c0_i32_1 = arith.constant 0 : i32
    return %c0_i32, %c0_i32_0 : i32, i32
  }
  func.func @transform_2(%arg0: i32) -> (i32, i32) {
    %c0_i32 = arith.constant 0 : i32
    %c0_i32_0 = arith.constant 0 : i32
    %c0_i32_1 = arith.constant 0 : i32
    return %c0_i32, %c0_i32_0 : i32, i32
  }
  func.func @transform_3(%arg0: i32) -> (i32, i32, i32) {
    %c0_i32 = arith.constant 0 : i32
    %c0_i32_0 = arith.constant 0 : i32
    %c0_i32_1 = arith.constant 0 : i32
    return %arg0, %c0_i32, %c0_i32_0 : i32, i32, i32
  }
}

module attributes {stable_mosaic.version = 11 : i64} {
  func.func @_stage_kernel(%arg0: i32, %arg1: i32, %arg2: memref<1x4x256xbf16, #tpu.memory_space<vmem>>, %arg3: memref<1x4x256xbf16, #tpu.memory_space<vmem>>, %arg4: memref<1x32x256xbf16, #tpu.memory_space<vmem>>, %arg5: memref<2x256xf32, #tpu.memory_space<vmem>>, %arg6: memref<32x4xbf16, #tpu.memory_space<vmem>>, %arg7: memref<32x32xbf16, #tpu.memory_space<vmem>>, %arg8: memref<32x32xbf16, #tpu.memory_space<vmem>>, %arg9: memref<16x32xbf16, #tpu.memory_space<vmem>>, %arg10: memref<8x16xbf16, #tpu.memory_space<vmem>>, %arg11: memref<4x8xbf16, #tpu.memory_space<vmem>>, %arg12: memref<2x4xbf16, #tpu.memory_space<vmem>>, %arg13: memref<32x6xf32, #tpu.memory_space<vmem>>, %arg14: memref<2x1xf32, #tpu.memory_space<vmem>>, %arg15: memref<1x4x256xf32, #tpu.memory_space<vmem>>) attributes {dimension_semantics = [#tpu.dimension_semantics<parallel>, #tpu.dimension_semantics<parallel>], iteration_bounds = array<i64: 2, 1>, scalar_prefetch = 0 : i64, scratch_operands = 0 : i64, tpu.core_type = #tpu.core_type<tc>, window_params = [{transform_indices = @transform_0, window_bounds = array<i64: 1, 4, 256>}, {transform_indices = @transform_1, window_bounds = array<i64: 1, 4, 256>}, {transform_indices = @transform_2, window_bounds = array<i64: 1, 32, 256>}, {transform_indices = @transform_3, window_bounds = array<i64: 2, 256>}, {pipeline_mode = #tpu.pipeline_mode<synchronous>, transform_indices = @transform_4, window_bounds = array<i64: 32, 4>}, {pipeline_mode = #tpu.pipeline_mode<synchronous>, transform_indices = @transform_5, window_bounds = array<i64: 32, 32>}, {pipeline_mode = #tpu.pipeline_mode<synchronous>, transform_indices = @transform_6, window_bounds = array<i64: 32, 32>}, {pipeline_mode = #tpu.pipeline_mode<synchronous>, transform_indices = @transform_7, window_bounds = array<i64: 16, 32>}, {pipeline_mode = #tpu.pipeline_mode<synchronous>, transform_indices = @transform_8, window_bounds = array<i64: 8, 16>}, {pipeline_mode = #tpu.pipeline_mode<synchronous>, transform_indices = @transform_9, window_bounds = array<i64: 4, 8>}, {pipeline_mode = #tpu.pipeline_mode<synchronous>, transform_indices = @transform_10, window_bounds = array<i64: 2, 4>}, {pipeline_mode = #tpu.pipeline_mode<synchronous>, transform_indices = @transform_11, window_bounds = array<i64: 32, 6>}, {pipeline_mode = #tpu.pipeline_mode<synchronous>, transform_indices = @transform_12, window_bounds = array<i64: 2, 1>}, {transform_indices = @transform_13, window_bounds = array<i64: 1, 4, 256>}]} {
    %c0 = arith.constant 0 : index
    %c0_0 = arith.constant 0 : index
    %c0_1 = arith.constant 0 : index
    %0 = vector.load %arg2[%c0, %c0_0, %c0_1] : memref<1x4x256xbf16, #tpu.memory_space<vmem>>, vector<1x4x256xbf16>
    %1 = vector.shape_cast %0 : vector<1x4x256xbf16> to vector<4x256xbf16>
    %c0_2 = arith.constant 0 : index
    %c0_3 = arith.constant 0 : index
    %2 = vector.load %arg6[%c0_2, %c0_3] : memref<32x4xbf16, #tpu.memory_space<vmem>>, vector<32x4xbf16>
    %cst = arith.constant dense<0.000000e+00> : vector<32x256xf32>
    %3 = tpu.matmul %2, %1, %cst {dimension_numbers = #tpu.dot_dimension_numbers<[1], [0], [0], [1], [0, 0, 1, 1], [], []>} : vector<32x4xbf16>, vector<4x256xbf16>, vector<32x256xf32> -> vector<32x256xf32>
    %c0_4 = arith.constant 0 : index
    %c0_5 = arith.constant 0 : index
    %4 = vector.load %arg13[%c0_4, %c0_5] : memref<32x6xf32, #tpu.memory_space<vmem>>, vector<32x1xf32>
    %5 = vector.broadcast %4 : vector<32x1xf32> to vector<32x256xf32>
    %6 = arith.addf %3, %5 : vector<32x256xf32>
    %cst_6 = arith.constant 5.000000e-01 : f32
    %7 = vector.broadcast %cst_6 : f32 to vector<32x256xf32>
    %8 = arith.mulf %7, %6 : vector<32x256xf32>
    %cst_7 = arith.constant 4.471500e-02 : f32
    %9 = vector.broadcast %cst_7 : f32 to vector<32x256xf32>
    %10 = arith.mulf %9, %6 : vector<32x256xf32>
    %11 = arith.mulf %10, %6 : vector<32x256xf32>
    %12 = arith.mulf %11, %6 : vector<32x256xf32>
    %13 = arith.addf %6, %12 : vector<32x256xf32>
    %cst_8 = arith.constant 0.797884583 : f32
    %14 = vector.broadcast %cst_8 : f32 to vector<32x256xf32>
    %15 = arith.mulf %14, %13 : vector<32x256xf32>
    %16 = math.tanh %15 : vector<32x256xf32>
    %cst_9 = arith.constant 1.000000e+00 : f32
    %17 = vector.broadcast %cst_9 : f32 to vector<32x256xf32>
    %18 = arith.addf %17, %16 : vector<32x256xf32>
    %19 = arith.mulf %8, %18 : vector<32x256xf32>
    %c0_10 = arith.constant 0 : index
    %c0_11 = arith.constant 0 : index
    %c0_12 = arith.constant 0 : index
    %20 = vector.load %arg4[%c0_10, %c0_11, %c0_12] : memref<1x32x256xbf16, #tpu.memory_space<vmem>>, vector<1x32x256xbf16>
    %21 = vector.shape_cast %20 : vector<1x32x256xbf16> to vector<32x256xbf16>
    %22 = arith.extf %21 : vector<32x256xbf16> to vector<32x256xf32>
    %23 = arith.addf %19, %22 : vector<32x256xf32>
    %c0_13 = arith.constant 0 : index
    %c0_14 = arith.constant 0 : index
    %24 = vector.load %arg7[%c0_13, %c0_14] : memref<32x32xbf16, #tpu.memory_space<vmem>>, vector<32x32xbf16>
    %25 = arith.truncf %23 : vector<32x256xf32> to vector<32x256xbf16>
    %cst_15 = arith.constant dense<0.000000e+00> : vector<32x256xf32>
    %26 = tpu.matmul %24, %25, %cst_15 {dimension_numbers = #tpu.dot_dimension_numbers<[1], [0], [0], [1], [0, 0, 1, 1], [], []>} : vector<32x32xbf16>, vector<32x256xbf16>, vector<32x256xf32> -> vector<32x256xf32>
    %c0_16 = arith.constant 0 : index
    %c1 = arith.constant 1 : index
    %27 = vector.load %arg13[%c0_16, %c1] : memref<32x6xf32, #tpu.memory_space<vmem>>, vector<32x1xf32>
    %28 = vector.broadcast %27 : vector<32x1xf32> to vector<32x256xf32>
    %29 = arith.addf %26, %28 : vector<32x256xf32>
    %cst_17 = arith.constant 5.000000e-01 : f32
    %30 = vector.broadcast %cst_17 : f32 to vector<32x256xf32>
    %31 = arith.mulf %30, %29 : vector<32x256xf32>
    %cst_18 = arith.constant 4.471500e-02 : f32
    %32 = vector.broadcast %cst_18 : f32 to vector<32x256xf32>
    %33 = arith.mulf %32, %29 : vector<32x256xf32>
    %34 = arith.mulf %33, %29 : vector<32x256xf32>
    %35 = arith.mulf %34, %29 : vector<32x256xf32>
    %36 = arith.addf %29, %35 : vector<32x256xf32>
    %cst_19 = arith.constant 0.797884583 : f32
    %37 = vector.broadcast %cst_19 : f32 to vector<32x256xf32>
    %38 = arith.mulf %37, %36 : vector<32x256xf32>
    %39 = math.tanh %38 : vector<32x256xf32>
    %cst_20 = arith.constant 1.000000e+00 : f32
    %40 = vector.broadcast %cst_20 : f32 to vector<32x256xf32>
    %41 = arith.addf %40, %39 : vector<32x256xf32>
    %42 = arith.mulf %31, %41 : vector<32x256xf32>
    %c0_21 = arith.constant 0 : index
    %c0_22 = arith.constant 0 : index
    %43 = vector.load %arg8[%c0_21, %c0_22] : memref<32x32xbf16, #tpu.memory_space<vmem>>, vector<32x32xbf16>
    %44 = arith.truncf %42 : vector<32x256xf32> to vector<32x256xbf16>
    %cst_23 = arith.constant dense<0.000000e+00> : vector<32x256xf32>
    %45 = tpu.matmul %43, %44, %cst_23 {dimension_numbers = #tpu.dot_dimension_numbers<[1], [0], [0], [1], [0, 0, 1, 1], [], []>} : vector<32x32xbf16>, vector<32x256xbf16>, vector<32x256xf32> -> vector<32x256xf32>
    %c0_24 = arith.constant 0 : index
    %c2 = arith.constant 2 : index
    %46 = vector.load %arg13[%c0_24, %c2] : memref<32x6xf32, #tpu.memory_space<vmem>>, vector<32x1xf32>
    %47 = vector.broadcast %46 : vector<32x1xf32> to vector<32x256xf32>
    %48 = arith.addf %45, %47 : vector<32x256xf32>
    %49 = arith.addf %48, %19 : vector<32x256xf32>
    %c0_25 = arith.constant 0 : index
    %c0_26 = arith.constant 0 : index
    %50 = vector.load %arg9[%c0_25, %c0_26] : memref<16x32xbf16, #tpu.memory_space<vmem>>, vector<16x32xbf16>
    %51 = arith.truncf %49 : vector<32x256xf32> to vector<32x256xbf16>
    %cst_27 = arith.constant dense<0.000000e+00> : vector<16x256xf32>
    %52 = tpu.matmul %50, %51, %cst_27 {dimension_numbers = #tpu.dot_dimension_numbers<[1], [0], [0], [1], [0, 0, 1, 1], [], []>} : vector<16x32xbf16>, vector<32x256xbf16>, vector<16x256xf32> -> vector<16x256xf32>
    %c0_28 = arith.constant 0 : index
    %c3 = arith.constant 3 : index
    %53 = vector.load %arg13[%c0_28, %c3] : memref<32x6xf32, #tpu.memory_space<vmem>>, vector<16x1xf32>
    %54 = vector.broadcast %53 : vector<16x1xf32> to vector<16x256xf32>
    %55 = arith.addf %52, %54 : vector<16x256xf32>
    %cst_29 = arith.constant 5.000000e-01 : f32
    %56 = vector.broadcast %cst_29 : f32 to vector<16x256xf32>
    %57 = arith.mulf %56, %55 : vector<16x256xf32>
    %cst_30 = arith.constant 4.471500e-02 : f32
    %58 = vector.broadcast %cst_30 : f32 to vector<16x256xf32>
    %59 = arith.mulf %58, %55 : vector<16x256xf32>
    %60 = arith.mulf %59, %55 : vector<16x256xf32>
    %61 = arith.mulf %60, %55 : vector<16x256xf32>
    %62 = arith.addf %55, %61 : vector<16x256xf32>
    %cst_31 = arith.constant 0.797884583 : f32
    %63 = vector.broadcast %cst_31 : f32 to vector<16x256xf32>
    %64 = arith.mulf %63, %62 : vector<16x256xf32>
    %65 = math.tanh %64 : vector<16x256xf32>
    %cst_32 = arith.constant 1.000000e+00 : f32
    %66 = vector.broadcast %cst_32 : f32 to vector<16x256xf32>
    %67 = arith.addf %66, %65 : vector<16x256xf32>
    %68 = arith.mulf %57, %67 : vector<16x256xf32>
    %c0_33 = arith.constant 0 : index
    %c0_34 = arith.constant 0 : index
    %69 = vector.load %arg10[%c0_33, %c0_34] : memref<8x16xbf16, #tpu.memory_space<vmem>>, vector<8x16xbf16>
    %70 = arith.truncf %68 : vector<16x256xf32> to vector<16x256xbf16>
    %cst_35 = arith.constant dense<0.000000e+00> : vector<8x256xf32>
    %71 = tpu.matmul %69, %70, %cst_35 {dimension_numbers = #tpu.dot_dimension_numbers<[1], [0], [0], [1], [0, 0, 1, 1], [], []>} : vector<8x16xbf16>, vector<16x256xbf16>, vector<8x256xf32> -> vector<8x256xf32>
    %c0_36 = arith.constant 0 : index
    %c4 = arith.constant 4 : index
    %72 = vector.load %arg13[%c0_36, %c4] : memref<32x6xf32, #tpu.memory_space<vmem>>, vector<8x1xf32>
    %73 = vector.broadcast %72 : vector<8x1xf32> to vector<8x256xf32>
    %74 = arith.addf %71, %73 : vector<8x256xf32>
    %cst_37 = arith.constant 5.000000e-01 : f32
    %75 = vector.broadcast %cst_37 : f32 to vector<8x256xf32>
    %76 = arith.mulf %75, %74 : vector<8x256xf32>
    %cst_38 = arith.constant 4.471500e-02 : f32
    %77 = vector.broadcast %cst_38 : f32 to vector<8x256xf32>
    %78 = arith.mulf %77, %74 : vector<8x256xf32>
    %79 = arith.mulf %78, %74 : vector<8x256xf32>
    %80 = arith.mulf %79, %74 : vector<8x256xf32>
    %81 = arith.addf %74, %80 : vector<8x256xf32>
    %cst_39 = arith.constant 0.797884583 : f32
    %82 = vector.broadcast %cst_39 : f32 to vector<8x256xf32>
    %83 = arith.mulf %82, %81 : vector<8x256xf32>
    %84 = math.tanh %83 : vector<8x256xf32>
    %cst_40 = arith.constant 1.000000e+00 : f32
    %85 = vector.broadcast %cst_40 : f32 to vector<8x256xf32>
    %86 = arith.addf %85, %84 : vector<8x256xf32>
    %87 = arith.mulf %76, %86 : vector<8x256xf32>
    %c0_41 = arith.constant 0 : index
    %c0_42 = arith.constant 0 : index
    %88 = vector.load %arg11[%c0_41, %c0_42] : memref<4x8xbf16, #tpu.memory_space<vmem>>, vector<4x8xbf16>
    %89 = arith.truncf %87 : vector<8x256xf32> to vector<8x256xbf16>
    %cst_43 = arith.constant dense<0.000000e+00> : vector<4x256xf32>
    %90 = tpu.matmul %88, %89, %cst_43 {dimension_numbers = #tpu.dot_dimension_numbers<[1], [0], [0], [1], [0, 0, 1, 1], [], []>} : vector<4x8xbf16>, vector<8x256xbf16>, vector<4x256xf32> -> vector<4x256xf32>
    %c0_44 = arith.constant 0 : index
    %c5 = arith.constant 5 : index
    %91 = vector.load %arg13[%c0_44, %c5] : memref<32x6xf32, #tpu.memory_space<vmem>>, vector<4x1xf32>
    %92 = vector.broadcast %91 : vector<4x1xf32> to vector<4x256xf32>
    %93 = arith.addf %90, %92 : vector<4x256xf32>
    %cst_45 = arith.constant 5.000000e-01 : f32
    %94 = vector.broadcast %cst_45 : f32 to vector<4x256xf32>
    %95 = arith.mulf %94, %93 : vector<4x256xf32>
    %cst_46 = arith.constant 4.471500e-02 : f32
    %96 = vector.broadcast %cst_46 : f32 to vector<4x256xf32>
    %97 = arith.mulf %96, %93 : vector<4x256xf32>
    %98 = arith.mulf %97, %93 : vector<4x256xf32>
    %99 = arith.mulf %98, %93 : vector<4x256xf32>
    %100 = arith.addf %93, %99 : vector<4x256xf32>
    %cst_47 = arith.constant 0.797884583 : f32
    %101 = vector.broadcast %cst_47 : f32 to vector<4x256xf32>
    %102 = arith.mulf %101, %100 : vector<4x256xf32>
    %103 = math.tanh %102 : vector<4x256xf32>
    %cst_48 = arith.constant 1.000000e+00 : f32
    %104 = vector.broadcast %cst_48 : f32 to vector<4x256xf32>
    %105 = arith.addf %104, %103 : vector<4x256xf32>
    %106 = arith.mulf %95, %105 : vector<4x256xf32>
    %c0_49 = arith.constant 0 : index
    %c0_50 = arith.constant 0 : index
    %107 = vector.load %arg12[%c0_49, %c0_50] : memref<2x4xbf16, #tpu.memory_space<vmem>>, vector<2x4xbf16>
    %108 = arith.truncf %106 : vector<4x256xf32> to vector<4x256xbf16>
    %cst_51 = arith.constant dense<0.000000e+00> : vector<2x256xf32>
    %109 = tpu.matmul %107, %108, %cst_51 {dimension_numbers = #tpu.dot_dimension_numbers<[1], [0], [0], [1], [0, 0, 1, 1], [], []>} : vector<2x4xbf16>, vector<4x256xbf16>, vector<2x256xf32> -> vector<2x256xf32>
    %c0_52 = arith.constant 0 : index
    %c0_53 = arith.constant 0 : index
    %110 = vector.load %arg14[%c0_52, %c0_53] : memref<2x1xf32, #tpu.memory_space<vmem>>, vector<2x1xf32>
    %111 = vector.broadcast %110 : vector<2x1xf32> to vector<2x256xf32>
    %112 = arith.addf %109, %111 : vector<2x256xf32>
    %c0_54 = arith.constant 0 : index
    %c0_55 = arith.constant 0 : index
    %113 = vector.load %arg5[%c0_54, %c0_55] : memref<2x256xf32, #tpu.memory_space<vmem>>, vector<2x256xf32>
    %114 = arith.addf %112, %113 : vector<2x256xf32>
    %115 = vector.extract_strided_slice %114 {offsets = [0, 0], sizes = [1, 256], strides = [1, 1]} : vector<2x256xf32> to vector<1x256xf32>
    %116 = vector.extract_strided_slice %114 {offsets = [1, 0], sizes = [1, 256], strides = [1, 1]} : vector<2x256xf32> to vector<1x256xf32>
    %cst_56 = arith.constant 1.000000e+00 : f32
    %117 = vector.broadcast %cst_56 : f32 to vector<1x256xf32>
    %118 = arith.addf %115, %117 : vector<1x256xf32>
    %cst_57 = arith.constant 8.000000e+00 : f32
    %119 = vector.broadcast %cst_57 : f32 to vector<1x256xf32>
    %120 = arith.mulf %118, %119 : vector<1x256xf32>
    %cst_58 = arith.constant 5.000000e-01 : f32
    %121 = vector.broadcast %cst_58 : f32 to vector<1x256xf32>
    %122 = arith.subf %120, %121 : vector<1x256xf32>
    %cst_59 = arith.constant 0.000000e+00 : f32
    %cst_60 = arith.constant 1.500000e+01 : f32
    %123 = vector.broadcast %cst_59 : f32 to vector<1x256xf32>
    %124 = arith.maximumf %123, %122 : vector<1x256xf32>
    %125 = vector.broadcast %cst_60 : f32 to vector<1x256xf32>
    %126 = arith.minimumf %125, %124 : vector<1x256xf32>
    %cst_61 = arith.constant 1.000000e+00 : f32
    %127 = vector.broadcast %cst_61 : f32 to vector<1x256xf32>
    %128 = arith.addf %116, %127 : vector<1x256xf32>
    %cst_62 = arith.constant 8.000000e+00 : f32
    %129 = vector.broadcast %cst_62 : f32 to vector<1x256xf32>
    %130 = arith.mulf %128, %129 : vector<1x256xf32>
    %cst_63 = arith.constant 5.000000e-01 : f32
    %131 = vector.broadcast %cst_63 : f32 to vector<1x256xf32>
    %132 = arith.subf %130, %131 : vector<1x256xf32>
    %cst_64 = arith.constant 0.000000e+00 : f32
    %cst_65 = arith.constant 1.500000e+01 : f32
    %133 = vector.broadcast %cst_64 : f32 to vector<1x256xf32>
    %134 = arith.maximumf %133, %132 : vector<1x256xf32>
    %135 = vector.broadcast %cst_65 : f32 to vector<1x256xf32>
    %136 = arith.minimumf %135, %134 : vector<1x256xf32>
    %137 = math.floor %126 : vector<1x256xf32>
    %138 = math.floor %136 : vector<1x256xf32>
    %139 = arith.subf %126, %137 : vector<1x256xf32>
    %140 = arith.subf %136, %138 : vector<1x256xf32>
    %141 = arith.fptosi %137 : vector<1x256xf32> to vector<1x256xi32>
    %142 = arith.fptosi %138 : vector<1x256xf32> to vector<1x256xi32>
    %c1_i32 = arith.constant 1 : i32
    %143 = vector.broadcast %c1_i32 : i32 to vector<1x256xi32>
    %144 = arith.addi %141, %143 : vector<1x256xi32>
    %c15_i32 = arith.constant 15 : i32
    %145 = vector.broadcast %c15_i32 : i32 to vector<1x256xi32>
    %146 = arith.minsi %144, %145 : vector<1x256xi32>
    %c1_i32_66 = arith.constant 1 : i32
    %147 = vector.broadcast %c1_i32_66 : i32 to vector<1x256xi32>
    %148 = arith.addi %142, %147 : vector<1x256xi32>
    %c15_i32_67 = arith.constant 15 : i32
    %149 = vector.broadcast %c15_i32_67 : i32 to vector<1x256xi32>
    %150 = arith.minsi %148, %149 : vector<1x256xi32>
    %151 = tpu.iota {dimensions = array<i32: 0>} : vector<16x256xi32>
    %152 = tpu.iota {dimensions = array<i32: 0>} : vector<16x256xi32>
    %153 = vector.broadcast %141 : vector<1x256xi32> to vector<16x256xi32>
    %154 = arith.cmpi eq, %151, %153 : vector<16x256xi32>
    %cst_68 = arith.constant 1.000000e+00 : f32
    %155 = vector.broadcast %cst_68 : f32 to vector<1x256xf32>
    %156 = arith.subf %155, %139 : vector<1x256xf32>
    %cst_69 = arith.constant 0.000000e+00 : f32
    %157 = vector.shape_cast %156 : vector<1x256xf32> to vector<1x256xf32>
    %158 = vector.broadcast %157 : vector<1x256xf32> to vector<16x256xf32>
    %159 = vector.broadcast %cst_69 : f32 to vector<16x256xf32>
    %160 = arith.select %154, %158, %159 : vector<16x256xi1>, vector<16x256xf32>
    %161 = vector.broadcast %146 : vector<1x256xi32> to vector<16x256xi32>
    %162 = arith.cmpi eq, %151, %161 : vector<16x256xi32>
    %cst_70 = arith.constant 0.000000e+00 : f32
    %163 = vector.shape_cast %139 : vector<1x256xf32> to vector<1x256xf32>
    %164 = vector.broadcast %163 : vector<1x256xf32> to vector<16x256xf32>
    %165 = vector.broadcast %cst_70 : f32 to vector<16x256xf32>
    %166 = arith.select %162, %164, %165 : vector<16x256xi1>, vector<16x256xf32>
    %167 = arith.addf %160, %166 : vector<16x256xf32>
    %168 = vector.broadcast %142 : vector<1x256xi32> to vector<16x256xi32>
    %169 = arith.cmpi eq, %152, %168 : vector<16x256xi32>
    %cst_71 = arith.constant 1.000000e+00 : f32
    %170 = vector.broadcast %cst_71 : f32 to vector<1x256xf32>
    %171 = arith.subf %170, %140 : vector<1x256xf32>
    %cst_72 = arith.constant 0.000000e+00 : f32
    %172 = vector.shape_cast %171 : vector<1x256xf32> to vector<1x256xf32>
    %173 = vector.broadcast %172 : vector<1x256xf32> to vector<16x256xf32>
    %174 = vector.broadcast %cst_72 : f32 to vector<16x256xf32>
    %175 = arith.select %169, %173, %174 : vector<16x256xi1>, vector<16x256xf32>
    %176 = vector.broadcast %150 : vector<1x256xi32> to vector<16x256xi32>
    %177 = arith.cmpi eq, %152, %176 : vector<16x256xi32>
    %cst_73 = arith.constant 0.000000e+00 : f32
    %178 = vector.shape_cast %140 : vector<1x256xf32> to vector<1x256xf32>
    %179 = vector.broadcast %178 : vector<1x256xf32> to vector<16x256xf32>
    %180 = vector.broadcast %cst_73 : f32 to vector<16x256xf32>
    %181 = arith.select %177, %179, %180 : vector<16x256xi1>, vector<16x256xf32>
    %182 = arith.addf %175, %181 : vector<16x256xf32>
    %183 = vector.shape_cast %182 : vector<16x256xf32> to vector<16x1x256xf32>
    %184 = vector.shape_cast %167 : vector<16x256xf32> to vector<1x16x256xf32>
    %185 = vector.broadcast %183 : vector<16x1x256xf32> to vector<16x16x256xf32>
    %186 = vector.broadcast %184 : vector<1x16x256xf32> to vector<16x16x256xf32>
    %187 = arith.mulf %185, %186 : vector<16x16x256xf32>
    %188 = vector.shape_cast %187 : vector<16x16x256xf32> to vector<256x256xf32>
    %c0_74 = arith.constant 0 : index
    %c0_75 = arith.constant 0 : index
    %c0_76 = arith.constant 0 : index
    %189 = vector.load %arg3[%c0_74, %c0_75, %c0_76] : memref<1x4x256xbf16, #tpu.memory_space<vmem>>, vector<1x4x256xbf16>
    %190 = vector.shape_cast %189 : vector<1x4x256xbf16> to vector<4x256xbf16>
    %191 = arith.truncf %188 : vector<256x256xf32> to vector<256x256xbf16>
    %cst_77 = arith.constant dense<0.000000e+00> : vector<4x256xf32>
    %192 = tpu.matmul %190, %191, %cst_77 {dimension_numbers = #tpu.dot_dimension_numbers<[1], [0], [0], [1], [0, 0, 1, 1], [], []>} : vector<4x256xbf16>, vector<256x256xbf16>, vector<4x256xf32> -> vector<4x256xf32>
    %c0_78 = arith.constant 0 : index
    %c0_79 = arith.constant 0 : index
    %c0_80 = arith.constant 0 : index
    %193 = vector.load %arg15[%c0_78, %c0_79, %c0_80] : memref<1x4x256xf32, #tpu.memory_space<vmem>>, vector<1x4x256xf32>
    %194 = vector.shape_cast %193 : vector<1x4x256xf32> to vector<4x256xf32>
    %195 = vector.shape_cast %192 : vector<4x256xf32> to vector<1x4x256xf32>
    tpu.vector_store %arg15[%c0_78, %c0_79, %c0_80], %195 {strides = array<i32>} : memref<1x4x256xf32, #tpu.memory_space<vmem>>, vector<1x4x256xf32>,
    return
  }
  func.func @transform_0(%arg0: i32, %arg1: i32) -> (i32, i32, i32) {
    %c0_i32 = arith.constant 0 : i32
    %c0_i32_0 = arith.constant 0 : i32
    return %arg0, %c0_i32, %arg1 : i32, i32, i32
  }
  func.func @transform_1(%arg0: i32, %arg1: i32) -> (i32, i32, i32) {
    %c0_i32 = arith.constant 0 : i32
    %c0_i32_0 = arith.constant 0 : i32
    %c0_i32_1 = arith.constant 0 : i32
    return %arg0, %c0_i32, %c0_i32_0 : i32, i32, i32
  }
  func.func @transform_2(%arg0: i32, %arg1: i32) -> (i32, i32, i32) {
    %c0_i32 = arith.constant 0 : i32
    %c0_i32_0 = arith.constant 0 : i32
    return %arg0, %c0_i32, %arg1 : i32, i32, i32
  }
  func.func @transform_3(%arg0: i32, %arg1: i32) -> (i32, i32) {
    %c0_i32 = arith.constant 0 : i32
    %c0_i32_0 = arith.constant 0 : i32
    return %c0_i32, %arg1 : i32, i32
  }
  func.func @transform_4(%arg0: i32, %arg1: i32) -> (i32, i32) {
    %c0_i32 = arith.constant 0 : i32
    %c0_i32_0 = arith.constant 0 : i32
    %c0_i32_1 = arith.constant 0 : i32
    return %c0_i32, %c0_i32_0 : i32, i32
  }
  func.func @transform_5(%arg0: i32, %arg1: i32) -> (i32, i32) {
    %c0_i32 = arith.constant 0 : i32
    %c0_i32_0 = arith.constant 0 : i32
    %c0_i32_1 = arith.constant 0 : i32
    return %c0_i32, %c0_i32_0 : i32, i32
  }
  func.func @transform_6(%arg0: i32, %arg1: i32) -> (i32, i32) {
    %c0_i32 = arith.constant 0 : i32
    %c0_i32_0 = arith.constant 0 : i32
    %c0_i32_1 = arith.constant 0 : i32
    return %c0_i32, %c0_i32_0 : i32, i32
  }
  func.func @transform_7(%arg0: i32, %arg1: i32) -> (i32, i32) {
    %c0_i32 = arith.constant 0 : i32
    %c0_i32_0 = arith.constant 0 : i32
    %c0_i32_1 = arith.constant 0 : i32
    return %c0_i32, %c0_i32_0 : i32, i32
  }
  func.func @transform_8(%arg0: i32, %arg1: i32) -> (i32, i32) {
    %c0_i32 = arith.constant 0 : i32
    %c0_i32_0 = arith.constant 0 : i32
    %c0_i32_1 = arith.constant 0 : i32
    return %c0_i32, %c0_i32_0 : i32, i32
  }
  func.func @transform_9(%arg0: i32, %arg1: i32) -> (i32, i32) {
    %c0_i32 = arith.constant 0 : i32
    %c0_i32_0 = arith.constant 0 : i32
    %c0_i32_1 = arith.constant 0 : i32
    return %c0_i32, %c0_i32_0 : i32, i32
  }
  func.func @transform_10(%arg0: i32, %arg1: i32) -> (i32, i32) {
    %c0_i32 = arith.constant 0 : i32
    %c0_i32_0 = arith.constant 0 : i32
    %c0_i32_1 = arith.constant 0 : i32
    return %c0_i32, %c0_i32_0 : i32, i32
  }
  func.func @transform_11(%arg0: i32, %arg1: i32) -> (i32, i32) {
    %c0_i32 = arith.constant 0 : i32
    %c0_i32_0 = arith.constant 0 : i32
    %c0_i32_1 = arith.constant 0 : i32
    return %c0_i32, %c0_i32_0 : i32, i32
  }
  func.func @transform_12(%arg0: i32, %arg1: i32) -> (i32, i32) {
    %c0_i32 = arith.constant 0 : i32
    %c0_i32_0 = arith.constant 0 : i32
    %c0_i32_1 = arith.constant 0 : i32
    return %c0_i32, %c0_i32_0 : i32, i32
  }
  func.func @transform_13(%arg0: i32, %arg1: i32) -> (i32, i32, i32) {
    %c0_i32 = arith.constant 0 : i32
    %c0_i32_0 = arith.constant 0 : i32
    return %arg0, %c0_i32, %arg1 : i32, i32, i32
  }
}

</mosaic_0001>

<llo_original>
// kernel: tile.10
$region0: #{tile.10}
  #allocation0 [shape = 's32[1]{0}', space=sflag, size = 0x4, scoped, tag = 'scoped memory for tile.10']
  %s0 = inlined_call_operand.vmem [shape: f32[16], index: 0, kind: input, shape index: {}]
  %s1 = inlined_call_operand.vmem [shape: f32[16,1,1,16], index: 1, kind: output, shape index: {}]
  // Predicated region
  $region2: #{tile.10} parent=0 // pred_check
    _
  $region3: #{tile.10} parent=0 // pred_check_branch
    %3 = sbr.rel (0) target = $region5
  $region4: #{tile.10} parent=0 // pred_region
    _
  $region5: #{tile.10} parent=0 // pred_fallthru
    _
  %v4 = vld [vmem:[%s0] ss:$0 sm:$0xff]
  %5 = vst [vmem:[%s1] sm:$0xff] %v4
  %s6 = scalar_lea.vmem %s1, 8
  %7 = vst [vmem:[%s6] sm:$0xff] %v4

// kernel: tile.11
$region0: #{tile.11}
  %s0 = inlined_call_operand.vmem [shape: f32[16,1,1,16], index: 0, kind: input, shape index: {}]
  %s1 = inlined_call_operand.vmem [shape: f32[1,256], index: 1, kind: output, shape index: {}]
  $region1: #{tile.11} parent=0
    #allocation0 [shape = 'u8[8192]{0}', space=vmem, size = 0x2000, scoped, tag = 'scoped mem for output reshape']
    %s2 = smov 3
    %v3 = vld [vmem:[%s0] ss:$8 sm:%s2]
    %vm4 = vcmask 130048
    %5 = vst.msk [vmem:[#allocation0] ss:$8 sm:$0x3] %vm4, %v3
    %s6 = scalar_lea.vmem %s0, 7
    %s7 = smov 3
    %v8 = vld [vmem:[%s6] ss:$8 sm:%s7]
    %9 = vrot.lane.b32.xlu0 %v8, 112
    %v10 = vpop.permute.xlu0 %9
    %vm11 = vcmask 1048448
    %12 = vst.msk [vmem:[#allocation0] ss:$8 sm:$0x3] %vm11, %v10
    %s13 = scalar_lea.vmem %s0, 6
    %s14 = smov 3
    %v15 = vld [vmem:[%s13] ss:$8 sm:%s14]
    %16 = vrot.lane.b32.xlu0 %v15, 96
    %v17 = vpop.permute.xlu0 %16
    %vm18 = vcmask 917248
    %19 = vst.msk [vmem:[#allocation0] ss:$8 sm:$0x3] %vm18, %v17
    %s20 = scalar_lea.vmem %s0, 5
    %s21 = smov 3
    %v22 = vld [vmem:[%s20] ss:$8 sm:%s21]
    %23 = vrot.lane.b32.xlu0 %v22, 80
    %v24 = vpop.permute.xlu0 %23
    %vm25 = vcmask 786048
    %26 = vst.msk [vmem:[#allocation0] ss:$8 sm:$0x3] %vm25, %v24
    %s27 = scalar_lea.vmem %s0, 4
    %s28 = smov 3
    %v29 = vld [vmem:[%s27] ss:$8 sm:%s28]
    %30 = vrot.lane.b32.xlu0 %v29, 64
    %v31 = vpop.permute.xlu0 %30
    %vm32 = vcmask 654848
    %33 = vst.msk [vmem:[#allocation0] ss:$8 sm:$0x3] %vm32, %v31
    %s34 = scalar_lea.vmem %s0, 3
    %s35 = smov 3
    %v36 = vld [vmem:[%s34] ss:$8 sm:%s35]
    %37 = vrot.lane.b32.xlu0 %v36, 48
    %v38 = vpop.permute.xlu0 %37
    %vm39 = vcmask 523648
    %40 = vst.msk [vmem:[#allocation0] ss:$8 sm:$0x3] %vm39, %v38
    %s41 = scalar_lea.vmem %s0, 2
    %s42 = smov 3
    %v43 = vld [vmem:[%s41] ss:$8 sm:%s42]
    %44 = vrot.lane.b32.xlu0 %v43, 32
    %v45 = vpop.permute.xlu0 %44
    %vm46 = vcmask 392448
    %47 = vst.msk [vmem:[#allocation0] ss:$8 sm:$0x3] %vm46, %v45
    %s48 = scalar_lea.vmem %s0, 1
    %s49 = smov 3
    %v50 = vld [vmem:[%s48] ss:$8 sm:%s49]
    %51 = vrot.lane.b32.xlu0 %v50, 16
    %v52 = vpop.permute.xlu0 %51
    %vm53 = vcmask 261248
    %54 = vst.msk [vmem:[#allocation0] ss:$8 sm:$0x3] %vm53, %v52
    %s56 = sshll.u32 1, 1
    %s57 = ssub.s32 %s56, 1
    %v59 = vld [vmem:[#allocation0] sm:%s57]
    %s60 = sshll.u32 1, 1
    %s61 = ssub.s32 %s60, 1
    %62 = vst [vmem:[%s1] sm:%s61] %v59
    %s63 = scalar_lea.vmem [#allocation0], 8
    %v64 = vld [vmem:[%s63] sm:%s57]
    %s65 = sshll.u32 1, 1
    %s66 = ssub.s32 %s65, 1
    %s67 = scalar_lea.vmem %s1, 1
    %68 = vst [vmem:[%s67] sm:%s66] %v64

// kernel: pixelvit_stage_forward.2
$region0: #{pixelvit_stage_forward.2}
  #allocation0 [shape = 'u32[]', space=smem, size = 0x4, offset = 0x4, fixed_abs, tag = 'smem constant byte address 0x4 - core index']
  #allocation1 [shape = 'u32[144,128]{1,0:T(1,128)}', space=vmem, size = 0x12000, scoped, tag = 'internal scratch']
  %s0 = inlined_call_operand.vmem [shape: f32[2,4,64], index: 0, kind: input, shape index: {}]
  %s1 = inlined_call_operand.vmem [shape: bf16[32,4], index: 1, kind: input, shape index: {}]
  %s2 = inlined_call_operand.vmem [shape: f32[32,1], index: 2, kind: input, shape index: {}]
  %s3 = inlined_call_operand.vmem [shape: f32[2,32,64], index: 3, kind: output, shape index: {}]
  %s4 = sld [smem:[#allocation0]]
  $region45: #{pixelvit_stage_forward.2} parent=0
    _
  %s6 = ssub.s32 1, %s4
  %s7 = scalar_select 0, %s6, %s4
  loop: start=0, step=1, limit=4
  $region2: #{pixelvit_stage_forward.2} parent=0 // loop_pre_header
    _
  $region3: #{pixelvit_stage_forward.2} parent=0 // loop_header
    %s9 = sphi 0, %s13
    %p10 = scmp.ge.s32.totalorder %s9, 4
    %s19 = sphi 0, %s21
    %s22 = sphi 0, %s19
    %s23 = sphi 0, %s22
    %s39 = sphi 0, %s23
    %s43 = sphi 0, %s43
    %s45 = sphi 0, %s43
    %s46 = sphi 0, %s45
    %s60 = sphi 0, %s46
    %s64 = sphi 0, %s64
    %s66 = sphi 0, %s64
    %s67 = sphi 0, %s66
    %s81 = sphi 0, %s67
    %s87 = sphi 0, %s89
    %s90 = sphi 0, %s87
    %s91 = sphi 0, %s90
    %s107 = sphi 0, %s91
  $region4: #{pixelvit_stage_forward.2} parent=0 // loop_header_branch
    %12 = sbr.rel (%p10) target = $region8
  $region5: #{pixelvit_stage_forward.2} parent=0 // loop_body
    %s14 = ssub.s32 %s9, 1
    %s15 = ssub.s32 %s9, 2
    %s16 = sadd.s32 %s9, 1
    %s17 = ssub.s32 %s9, %s16
    %p18 = scmp.eq.s32.totalorder %s17, 0
    %s20 = sadd.s32 %s19, 1
    %s21 = scalar_select %p18, %s19, %s20
    %p24 = pneg %p18
    %p25 = scmp.eq.s32.totalorder %s9, 1
    %p26 = por %p24, %p25
    %p27 = scmp.ne.s32.totalorder %s19, %s22
    %p28 = scmp.eq.s32.totalorder %s9, 0
    %p29 = por %p27, %p28
    %p30 = scmp.ne.s32.totalorder %s19, %s22
    %p31 = scmp.eq.s32.totalorder %s14, 1
    %p32 = por %p30, %p31
    %p33 = scmp.ne.s32.totalorder %s22, %s23
    %p34 = scmp.eq.s32.totalorder %s14, 0
    %p35 = por %p33, %p34
    %p36 = scmp.ne.s32.totalorder %s22, %s23
    %p37 = scmp.eq.s32.totalorder %s15, 1
    %p38 = por %p36, %p37
    %p40 = scmp.ne.s32.totalorder %s23, %s39
    %p41 = scmp.eq.s32.totalorder %s15, 0
    %p42 = por %p40, %p41
    %s44 = sadd.s32 %s43, 1
    %p47 = scmp.eq.s32.totalorder %s9, 1
    %p48 = scmp.ne.s32.totalorder %s43, %s45
    %p49 = scmp.eq.s32.totalorder %s9, 0
    %p50 = por %p48, %p49
    %p51 = scmp.ne.s32.totalorder %s43, %s45
    %p52 = scmp.eq.s32.totalorder %s14, 1
    %p53 = por %p51, %p52
    %p54 = scmp.ne.s32.totalorder %s45, %s46
    %p55 = scmp.eq.s32.totalorder %s14, 0
    %p56 = por %p54, %p55
    %p57 = scmp.ne.s32.totalorder %s45, %s46
    %p58 = scmp.eq.s32.totalorder %s15, 1
    %p59 = por %p57, %p58
    %p61 = scmp.ne.s32.totalorder %s46, %s60
    %p62 = scmp.eq.s32.totalorder %s15, 0
    %p63 = por %p61, %p62
    %s65 = sadd.s32 %s64, 1
    %p68 = scmp.eq.s32.totalorder %s9, 1
    %p69 = scmp.ne.s32.totalorder %s64, %s66
    %p70 = scmp.eq.s32.totalorder %s9, 0
    %p71 = por %p69, %p70
    %p72 = scmp.ne.s32.totalorder %s64, %s66
    %p73 = scmp.eq.s32.totalorder %s14, 1
    %p74 = por %p72, %p73
    %p75 = scmp.ne.s32.totalorder %s66, %s67
    %p76 = scmp.eq.s32.totalorder %s14, 0
    %p77 = por %p75, %p76
    %p78 = scmp.ne.s32.totalorder %s66, %s67
    %p79 = scmp.eq.s32.totalorder %s15, 1
    %p80 = por %p78, %p79
    %p82 = scmp.ne.s32.totalorder %s67, %s81
    %p83 = scmp.eq.s32.totalorder %s15, 0
    %p84 = por %p82, %p83
    %s85 = ssub.s32 %s9, %s16
    %p86 = scmp.eq.s32.totalorder %s85, 0
    %s88 = sadd.s32 %s87, 1
    %s89 = scalar_select %p86, %s87, %s88
    %p92 = pneg %p86
    %p93 = scmp.eq.s32.totalorder %s9, 1
    %p94 = por %p92, %p93
    %p95 = scmp.ne.s32.totalorder %s87, %s90
    %p96 = scmp.eq.s32.totalorder %s9, 0
    %p97 = por %p95, %p96
    %p98 = scmp.ne.s32.totalorder %s87, %s90
    %p99 = scmp.eq.s32.totalorder %s14, 1
    %p100 = por %p98, %p99
    %p101 = scmp.ne.s32.totalorder %s90, %s91
    %p102 = scmp.eq.s32.totalorder %s14, 0
    %p103 = por %p101, %p102
    %p104 = scmp.ne.s32.totalorder %s90, %s91
    %p105 = scmp.eq.s32.totalorder %s15, 1
    %p106 = por %p104, %p105
    %p108 = scmp.ne.s32.totalorder %s91, %s107
    %p109 = scmp.eq.s32.totalorder %s15, 0
    %p110 = por %p108, %p109
    %p111 = scmp.le.s32.totalorder 1, %s9
    %p112 = scmp.lt.s32.totalorder %s9, 3
    %p113 = pnand %p111, %p112
    %p114 = pneg %p113
    // Predicated region
    $region9: #{pixelvit_stage_forward.2} parent=5 // pred_check
      _
    $region10: #{pixelvit_stage_forward.2} parent=5 // pred_check_branch
      %116 = sbr.rel (%p113) target = $region12
    $region11: #{pixelvit_stage_forward.2} parent=5 // pred_region
      %s117 = ssub.s32 %s9, 1
      // Predicated region
      $region13: #{pixelvit_stage_forward.2} parent=11 // pred_check
        %p118 = pneg %p56
      $region14: #{pixelvit_stage_forward.2} parent=11 // pred_check_branch
        %120 = sbr.rel (%p118) target = $region16
      $region15: #{pixelvit_stage_forward.2} parent=11 // pred_region
        _
      $region16: #{pixelvit_stage_forward.2} parent=11 // pred_fallthru
        _
      // Predicated region
      $region17: #{pixelvit_stage_forward.2} parent=11 // pred_check
        %p121 = pneg %p77
      $region18: #{pixelvit_stage_forward.2} parent=11 // pred_check_branch
        %123 = sbr.rel (%p121) target = $region20
      $region19: #{pixelvit_stage_forward.2} parent=11 // pred_region
        _
      $region20: #{pixelvit_stage_forward.2} parent=11 // pred_fallthru
        _
    $region12: #{pixelvit_stage_forward.2} parent=5 // pred_fallthru
      _
    %p124 = scmp.lt.s32.totalorder %s9, 2
    // Predicated region
    $region21: #{pixelvit_stage_forward.2} parent=5 // pred_check
      %p125 = pneg %p124
    $region22: #{pixelvit_stage_forward.2} parent=5 // pred_check_branch
      %127 = sbr.rel (%p125) target = $region24
    $region23: #{pixelvit_stage_forward.2} parent=5 // pred_region
      // Predicated region
      $region25: #{pixelvit_stage_forward.2} parent=23 // pred_check
        %p128 = pneg %p29
      $region26: #{pixelvit_stage_forward.2} parent=23 // pred_check_branch
        %130 = sbr.rel (%p128) target = $region28
      $region27: #{pixelvit_stage_forward.2} parent=23 // pred_region
        %p131 = scmp.lt.s32.totalorder %s9, 1
        %s132 = scalar_select %p131, %s9, 1
        %s133 = smul.addr %s132, 4
        %s134 = scalar_lea.vmem %s0, %s133
      $region28: #{pixelvit_stage_forward.2} parent=23 // pred_fallthru
        _
    $region24: #{pixelvit_stage_forward.2} parent=5 // pred_fallthru
      _
    %p135 = scmp.le.s32.totalorder 1, %s9
    %p136 = scmp.lt.s32.totalorder %s9, 3
    %p137 = pnand %p135, %p136
    %p138 = pneg %p137
    // Predicated region
    $region29: #{pixelvit_stage_forward.2} parent=5 // pred_check
      _
    $region30: #{pixelvit_stage_forward.2} parent=5 // pred_check_branch
      %140 = sbr.rel (%p137) target = $region32
    $region31: #{pixelvit_stage_forward.2} parent=5 // pred_region
      %s141 = ssub.s32 %s9, 1
      %p142 = scmp.lt.s32.totalorder %s14, 1
      %s143 = scalar_select %p142, %s14, 1
      %s144 = smul.addr %s143, 4
      %s145 = scalar_lea.vmem %s0, %s144
      %p146 = pneg %p35
      %p147 = pneg %p32
      %p148 = pneg %p56
      %p149 = pneg %p53
      %p150 = pneg %p77
      %p151 = pneg %p74
      %p152 = pneg %p103
      %p153 = pneg %p100
      %p154 = scmp.lt.s32.totalorder %s14, 1
      %s155 = scalar_select %p154, %s14, 1
      %s156 = smul.addr %s155, 4
      %s157 = smul.addr %s156, 8
      %s158 = scalar_lea.vmem %s3, %s157
      %p159 = scmp.lt.s32.totalorder %s14, 1
      %s160 = scalar_select %p159, %s14, 1
      %s161 = smul.addr %s160, 4
      %s162 = scalar_lea.vmem %s0, %s161
      %p163 = scmp.lt.s32.totalorder %s14, 1
      %s164 = scalar_select %p163, %s14, 1
      %s165 = smul.addr %s164, 4
      %s166 = smul.addr %s165, 8
      %s167 = scalar_lea.vmem %s3, %s166
      %v169 = vld [vmem:[%s1] sm:$0xf]
      %v170 = vld [vmem:[%s1 + $0x4] sm:$0xf]
      %v171 = vld [vmem:[%s1 + $0x8] sm:$0xf]
      %v172 = vld [vmem:[%s1 + $0xc] sm:$0xf]
      %v173 = vld [vmem:[%s162] sm:$0xf]
      %v174 = vpack.c.bf16 %v173, %v173
      %v175 = vld [vmem:[%s2] sm:$0xff]
      %v176 = vld [vmem:[%s2 + $0x8] sm:$0xff]
      %v177 = vld [vmem:[%s2 + $0x10] sm:$0xff]
      %v178 = vld [vmem:[%s2 + $0x18] sm:$0xff]
      %180 = vset.pattern.permute.xlu0 0
      %181 = vperm.xlu0 %180, %v175
      %v182 = vpop.permute.xlu0 %181
      %185 = vset.pattern.permute.xlu0 0
      %186 = vperm.xlu0 %185, %v176
      %v187 = vpop.permute.xlu0 %186
      %190 = vset.pattern.permute.xlu0 0
      %191 = vperm.xlu0 %190, %v177
      %v192 = vpop.permute.xlu0 %191
      %195 = vset.pattern.permute.xlu0 0
      %196 = vperm.xlu0 %195, %v178
      %v197 = vpop.permute.xlu0 %196
      %v203 = vunpack.c.l.b16 %v169
      %v204 = vunpack.c.l.b16 %v170
      %v205 = vunpack.c.l.b16 %v171
      %v206 = vunpack.c.l.b16 %v172
      %v207 = vpack.c.b16 %v204, %v203
      %v208 = vpack.c.b16 %v206, %v205
      %vm209 = vcmask 31744
      %v211 = vsel %vm209, %v207, 0
      %v214 = vsel %vm209, %v208, 0
      %vm216 = vcmask 1041408
      %v218 = vsel %vm216, %v174, 0
      %220 = vmatprep.subr.bf16.mxu0 0
      %221 = vmatpush1.bf16.msra.mxu0 0
      %222 = vmatprep.subr.bf16.mxu0 0
      %223 = vmatpush1.bf16.msra.mxu0 0
      %224 = vmatprep.subr.bf16.mxu0 0
      %225 = vmatpush1.bf16.msra.mxu0 0
      %226 = vmatprep.subr.bf16.mxu0 0
      %227 = vmatpush1.bf16.msra.mxu0 0
      %228 = vmatprep.subr.bf16.mxu0 0
      %229 = vmatpush1.bf16.msra.mxu0 0
      %230 = vmatprep.subr.bf16.mxu0 0
      %231 = vmatpush1.bf16.msra.mxu0 0
      %232 = vmatprep.subr.bf16.mxu0 0
      %233 = vmatpush1.bf16.msra.mxu0 0
      %234 = vmatprep.subr.bf16.mxu0 0
      %235 = vmatpush1.bf16.msra.mxu0 %v218
      %236 = vmatprep.subr.bf16.mxu0 0
      %237 = vmatpush2.bf16.msra.mxu0 0
      %238 = vmatprep.subr.bf16.mxu0 0
      %239 = vmatpush2.bf16.msra.mxu0 0
      %240 = vmatprep.subr.bf16.mxu0 0
      %241 = vmatpush2.bf16.msra.mxu0 0
      %242 = vmatprep.subr.bf16.mxu0 0
      %243 = vmatpush2.bf16.msra.mxu0 0
      %244 = vmatprep.subr.bf16.mxu0 0
      %245 = vmatpush2.bf16.msra.mxu0 0
      %246 = vmatprep.subr.bf16.mxu0 0
      %247 = vmatpush2.bf16.msra.mxu0 0
      %248 = vmatprep.subr.bf16.mxu0 0
      %249 = vmatpush2.bf16.msra.mxu0 0
      %250 = vmatprep.subr.bf16.mxu0 0
      %251 = vmatpush2.bf16.msra.mxu0 0
      %252 = vmatprep.mubr.bf16.mxu0 0
      %253 = vmatmul.mubr.bf16.gmra.mxu0 %v211
      %v254 = vpop.f32.mrf.mxu0
      %v255 = vadd.f32 %v182, %v254
      %v256 = vpop.f32.mrf.mxu0
      %v257 = vpop.f32.mrf.mxu0
      %v258 = vadd.f32 %v187, %v257
      %v259 = vpop.f32.mrf.mxu0
      %260 = vmatprep.mubr.bf16.mxu0 0
      %261 = vmatmul.mubr.bf16.gmra.mxu0 %v214
      %v262 = vpop.f32.mrf.mxu0
      %v263 = vadd.f32 %v192, %v262
      %v264 = vpop.f32.mrf.mxu0
      %v265 = vpop.f32.mrf.mxu0
      %v266 = vadd.f32 %v197, %v265
      %v267 = vpop.f32.mrf.mxu0
      %268 = vdwg.mxu0
      %v269 = vmul.f32 %v255, 0.5
      %v270 = vmul.f32 %v258, 0.5
      %v271 = vmul.f32 %v263, 0.5
      %v272 = vmul.f32 %v266, 0.5
      %v273 = vmul.f32 %v255, 0.044715
      %v274 = vmul.f32 %v258, 0.044715
      %v275 = vmul.f32 %v263, 0.044715
      %v276 = vmul.f32 %v266, 0.044715
      %v277 = vmul.f32 %v273, %v255
      %v278 = vmul.f32 %v274, %v258
      %v279 = vmul.f32 %v275, %v263
      %v280 = vmul.f32 %v276, %v266
      %v281 = vmul.f32 %v277, %v255
      %v282 = vmul.f32 %v278, %v258
      %v283 = vmul.f32 %v279, %v263
      %v284 = vmul.f32 %v280, %v266
      %v285 = vadd.f32 %v255, %v281
      %v286 = vadd.f32 %v258, %v282
      %v287 = vadd.f32 %v263, %v283
      %v288 = vadd.f32 %v266, %v284
      %v289 = vmul.f32 %v285, 0.7978846
      %v290 = vmul.f32 %v286, 0.7978846
      %v291 = vmul.f32 %v287, 0.7978846
      %v292 = vmul.f32 %v288, 0.7978846
      %v293 = vtanh.pop %v289
      %v294 = vtanh.pop %v290
      %v295 = vtanh.pop %v291
      %v296 = vtanh.pop %v292
      %v297 = vadd.f32 %v293, 1.0
      %v298 = vadd.f32 %v294, 1.0
      %v299 = vadd.f32 %v295, 1.0
      %v300 = vadd.f32 %v296, 1.0
      %v301 = vmul.f32 %v269, %v297
      %v302 = vmul.f32 %v270, %v298
      %v303 = vmul.f32 %v271, %v299
      %v304 = vmul.f32 %v272, %v300
      %vm305 = vcmask 523264
      %306 = vst.msk [vmem:[%s167] sm:$0xff] %vm305, %v301
      %307 = vst.msk [vmem:[%s167 + $0x8] sm:$0xff] %vm305, %v302
      %308 = vst.msk [vmem:[%s167 + $0x10] sm:$0xff] %vm305, %v303
      %309 = vst.msk [vmem:[%s167 + $0x18] sm:$0xff] %vm305, %v304
      %p310 = scmp.lt.s32.totalorder %s14, 1
      %s311 = scalar_select %p310, %s14, 1
      %s312 = smul.addr %s311, 4
      %s313 = smul.addr %s312, 8
      %s314 = scalar_lea.vmem %s3, %s313
      // Predicated region
      $region33: #{pixelvit_stage_forward.2} parent=31 // pred_check
        %p315 = pneg %p100
      $region34: #{pixelvit_stage_forward.2} parent=31 // pred_check_branch
        %317 = sbr.rel (%p315) target = $region36
      $region35: #{pixelvit_stage_forward.2} parent=31 // pred_region
        _
      $region36: #{pixelvit_stage_forward.2} parent=31 // pred_fallthru
        _
    $region32: #{pixelvit_stage_forward.2} parent=5 // pred_fallthru
      _
    %p318 = scmp.le.s32.totalorder 2, %s9
    // Predicated region
    $region37: #{pixelvit_stage_forward.2} parent=5 // pred_check
      %p319 = pneg %p318
    $region38: #{pixelvit_stage_forward.2} parent=5 // pred_check_branch
      %321 = sbr.rel (%p319) target = $region40
    $region39: #{pixelvit_stage_forward.2} parent=5 // pred_region
      %s322 = ssub.s32 %s9, 2
      // Predicated region
      $region41: #{pixelvit_stage_forward.2} parent=39 // pred_check
        %p323 = pneg %p106
      $region42: #{pixelvit_stage_forward.2} parent=39 // pred_check_branch
        %325 = sbr.rel (%p323) target = $region44
      $region43: #{pixelvit_stage_forward.2} parent=39 // pred_region
        %p326 = scmp.lt.s32.totalorder %s15, 1
        %s327 = scalar_select %p326, %s15, 1
        %s328 = smul.addr %s327, 4
        %s329 = smul.addr %s328, 8
        %s330 = scalar_lea.vmem %s3, %s329
      $region44: #{pixelvit_stage_forward.2} parent=39 // pred_fallthru
        _
    $region40: #{pixelvit_stage_forward.2} parent=5 // pred_fallthru
      _
  $region6: #{pixelvit_stage_forward.2} parent=0 // loop_footer
    %s13 = sadd.s32 1, %s9
  $region7: #{pixelvit_stage_forward.2} parent=0 // loop_footer_branch
    %8 = sbr.rel target = $region3
  $region8: #{pixelvit_stage_forward.2} parent=0 // loop_exit
    _

// kernel: pixelvit_stage_forward.3
$region0: #{pixelvit_stage_forward.3}
  #allocation0 [shape = 'u32[]', space=smem, size = 0x4, offset = 0x4, fixed_abs, tag = 'smem constant byte address 0x4 - core index']
  #allocation1 [shape = 'u32[144,128]{1,0:T(1,128)}', space=vmem, size = 0x12000, scoped, tag = 'internal scratch']
  %s0 = inlined_call_operand.vmem [shape: bf16[2,4,256], index: 0, kind: input, shape index: {}, may-alias: {0,1}]
  %s1 = inlined_call_operand.vmem [shape: bf16[2,4,256], index: 1, kind: input, shape index: {}, may-alias: {0,1}]
  %s2 = inlined_call_operand.vmem [shape: bf16[2,32,256], index: 2, kind: input, shape index: {}]
  %s3 = inlined_call_operand.vmem [shape: f32[2,256], index: 3, kind: input, shape index: {}]
  %s4 = inlined_call_operand.vmem [shape: bf16[32,4], index: 4, kind: input, shape index: {}]
  %s5 = inlined_call_operand.vmem [shape: bf16[32,32], index: 5, kind: input, shape index: {}]
  %s6 = inlined_call_operand.vmem [shape: bf16[32,32], index: 6, kind: input, shape index: {}]
  %s7 = inlined_call_operand.vmem [shape: bf16[16,32], index: 7, kind: input, shape index: {}]
  %s8 = inlined_call_operand.vmem [shape: bf16[8,16], index: 8, kind: input, shape index: {}]
  %s9 = inlined_call_operand.vmem [shape: bf16[4,8], index: 9, kind: input, shape index: {}]
  %s10 = inlined_call_operand.vmem [shape: bf16[2,4], index: 10, kind: input, shape index: {}]
  %s11 = inlined_call_operand.vmem [shape: f32[32,6], index: 11, kind: input, shape index: {}]
  %s12 = inlined_call_operand.vmem [shape: f32[2,1], index: 12, kind: input, shape index: {}]
  %s13 = inlined_call_operand.vmem [shape: f32[2,4,256], index: 13, kind: output, shape index: {}]
  %s14 = sld [smem:[#allocation0]]
  $region85: #{pixelvit_stage_forward.3} parent=0
    _
  %s16 = ssub.s32 1, %s14
  %s17 = scalar_select 0, %s16, %s14
  loop: start=0, step=1, limit=4
  $region2: #{pixelvit_stage_forward.3} parent=0 // loop_pre_header
    _
  $region3: #{pixelvit_stage_forward.3} parent=0 // loop_header
    %s19 = sphi 0, %s23
    %p20 = scmp.ge.s32.totalorder %s19, 4
    %s26 = sphi 0, %s38
    %s27 = sphi 0, %s34
    %s28 = sphi 0, %s26
    %s29 = sphi 0, %s27
    %s30 = sphi 0, %s28
    %s31 = sphi 0, %s29
    %s43 = sphi 0, %s45
    %s46 = sphi 0, %s43
    %s47 = sphi 0, %s46
    %s63 = sphi 0, %s47
    %s69 = sphi 0, %s71
    %s72 = sphi 0, %s69
    %s73 = sphi 0, %s72
    %s89 = sphi 0, %s73
    %s97 = sphi 0, %s99
    %s100 = sphi 0, %s97
    %s101 = sphi 0, %s100
    %s117 = sphi 0, %s101
    %s123 = sphi 0, %s125
    %s126 = sphi 0, %s123
    %s127 = sphi 0, %s126
    %s143 = sphi 0, %s127
    %s147 = sphi 0, %s147
    %s149 = sphi 0, %s147
    %s150 = sphi 0, %s149
    %s164 = sphi 0, %s150
    %s168 = sphi 0, %s168
    %s170 = sphi 0, %s168
    %s171 = sphi 0, %s170
    %s185 = sphi 0, %s171
    %s189 = sphi 0, %s189
    %s191 = sphi 0, %s189
    %s192 = sphi 0, %s191
    %s206 = sphi 0, %s192
    %s210 = sphi 0, %s210
    %s212 = sphi 0, %s210
    %s213 = sphi 0, %s212
    %s227 = sphi 0, %s213
    %s231 = sphi 0, %s231
    %s233 = sphi 0, %s231
    %s234 = sphi 0, %s233
    %s248 = sphi 0, %s234
    %s252 = sphi 0, %s252
    %s254 = sphi 0, %s252
    %s255 = sphi 0, %s254
    %s269 = sphi 0, %s255
    %s273 = sphi 0, %s273
    %s275 = sphi 0, %s273
    %s276 = sphi 0, %s275
    %s290 = sphi 0, %s276
    %s294 = sphi 0, %s294
    %s296 = sphi 0, %s294
    %s297 = sphi 0, %s296
    %s311 = sphi 0, %s297
    %s315 = sphi 0, %s315
    %s317 = sphi 0, %s315
    %s318 = sphi 0, %s317
    %s332 = sphi 0, %s318
    %s340 = sphi 0, %s342
    %s343 = sphi 0, %s340
    %s344 = sphi 0, %s343
    %s360 = sphi 0, %s344
  $region4: #{pixelvit_stage_forward.3} parent=0 // loop_header_branch
    %22 = sbr.rel (%p20) target = $region8
  $region5: #{pixelvit_stage_forward.3} parent=0 // loop_body
    %s24 = ssub.s32 %s19, 1
    %s25 = ssub.s32 %s19, 2
    %s32 = sadd.s32 1, %s27
    %p33 = scmp.ge.s32.totalorder %s32, 1
    %s34 = scalar_select %p33, 0, %s32
    %s35 = sadd.s32 1, %s26
    %s36 = scalar_select %p33, %s35, %s26
    %p37 = scmp.ge.s32.totalorder %s36, 2
    %s38 = scalar_select %p37, 0, %s36
    %s39 = ssub.s32 %s26, %s38
    %s40 = ssub.s32 %s27, %s34
    %s41 = sor.u32 %s39, %s40
    %p42 = scmp.eq.s32.totalorder %s41, 0
    %s44 = sadd.s32 %s43, 1
    %s45 = scalar_select %p42, %s43, %s44
    %p48 = pneg %p42
    %p49 = scmp.eq.s32.totalorder %s19, 1
    %p50 = por %p48, %p49
    %p51 = scmp.ne.s32.totalorder %s43, %s46
    %p52 = scmp.eq.s32.totalorder %s19, 0
    %p53 = por %p51, %p52
    %p54 = scmp.ne.s32.totalorder %s43, %s46
    %p55 = scmp.eq.s32.totalorder %s24, 1
    %p56 = por %p54, %p55
    %p57 = scmp.ne.s32.totalorder %s46, %s47
    %p58 = scmp.eq.s32.totalorder %s24, 0
    %p59 = por %p57, %p58
    %p60 = scmp.ne.s32.totalorder %s46, %s47
    %p61 = scmp.eq.s32.totalorder %s25, 1
    %p62 = por %p60, %p61
    %p64 = scmp.ne.s32.totalorder %s47, %s63
    %p65 = scmp.eq.s32.totalorder %s25, 0
    %p66 = por %p64, %p65
    %s67 = ssub.s32 %s26, %s38
    %p68 = scmp.eq.s32.totalorder %s67, 0
    %s70 = sadd.s32 %s69, 1
    %s71 = scalar_select %p68, %s69, %s70
    %p74 = pneg %p68
    %p75 = scmp.eq.s32.totalorder %s19, 1
    %p76 = por %p74, %p75
    %p77 = scmp.ne.s32.totalorder %s69, %s72
    %p78 = scmp.eq.s32.totalorder %s19, 0
    %p79 = por %p77, %p78
    %p80 = scmp.ne.s32.totalorder %s69, %s72
    %p81 = scmp.eq.s32.totalorder %s24, 1
    %p82 = por %p80, %p81
    %p83 = scmp.ne.s32.totalorder %s72, %s73
    %p84 = scmp.eq.s32.totalorder %s24, 0
    %p85 = por %p83, %p84
    %p86 = scmp.ne.s32.totalorder %s72, %s73
    %p87 = scmp.eq.s32.totalorder %s25, 1
    %p88 = por %p86, %p87
    %p90 = scmp.ne.s32.totalorder %s73, %s89
    %p91 = scmp.eq.s32.totalorder %s25, 0
    %p92 = por %p90, %p91
    %s93 = ssub.s32 %s26, %s38
    %s94 = ssub.s32 %s27, %s34
    %s95 = sor.u32 %s93, %s94
    %p96 = scmp.eq.s32.totalorder %s95, 0
    %s98 = sadd.s32 %s97, 1
    %s99 = scalar_select %p96, %s97, %s98
    %p102 = pneg %p96
    %p103 = scmp.eq.s32.totalorder %s19, 1
    %p104 = por %p102, %p103
    %p105 = scmp.ne.s32.totalorder %s97, %s100
    %p106 = scmp.eq.s32.totalorder %s19, 0
    %p107 = por %p105, %p106
    %p108 = scmp.ne.s32.totalorder %s97, %s100
    %p109 = scmp.eq.s32.totalorder %s24, 1
    %p110 = por %p108, %p109
    %p111 = scmp.ne.s32.totalorder %s100, %s101
    %p112 = scmp.eq.s32.totalorder %s24, 0
    %p113 = por %p111, %p112
    %p114 = scmp.ne.s32.totalorder %s100, %s101
    %p115 = scmp.eq.s32.totalorder %s25, 1
    %p116 = por %p114, %p115
    %p118 = scmp.ne.s32.totalorder %s101, %s117
    %p119 = scmp.eq.s32.totalorder %s25, 0
    %p120 = por %p118, %p119
    %s121 = ssub.s32 %s27, %s34
    %p122 = scmp.eq.s32.totalorder %s121, 0
    %s124 = sadd.s32 %s123, 1
    %s125 = scalar_select %p122, %s123, %s124
    %p128 = pneg %p122
    %p129 = scmp.eq.s32.totalorder %s19, 1
    %p130 = por %p128, %p129
    %p131 = scmp.ne.s32.totalorder %s123, %s126
    %p132 = scmp.eq.s32.totalorder %s19, 0
    %p133 = por %p131, %p132
    %p134 = scmp.ne.s32.totalorder %s123, %s126
    %p135 = scmp.eq.s32.totalorder %s24, 1
    %p136 = por %p134, %p135
    %p137 = scmp.ne.s32.totalorder %s126, %s127
    %p138 = scmp.eq.s32.totalorder %s24, 0
    %p139 = por %p137, %p138
    %p140 = scmp.ne.s32.totalorder %s126, %s127
    %p141 = scmp.eq.s32.totalorder %s25, 1
    %p142 = por %p140, %p141
    %p144 = scmp.ne.s32.totalorder %s127, %s143
    %p145 = scmp.eq.s32.totalorder %s25, 0
    %p146 = por %p144, %p145
    %s148 = sadd.s32 %s147, 1
    %p151 = scmp.eq.s32.totalorder %s19, 1
    %p152 = scmp.ne.s32.totalorder %s147, %s149
    %p153 = scmp.eq.s32.totalorder %s19, 0
    %p154 = por %p152, %p153
    %p155 = scmp.ne.s32.totalorder %s147, %s149
    %p156 = scmp.eq.s32.totalorder %s24, 1
    %p157 = por %p155, %p156
    %p158 = scmp.ne.s32.totalorder %s149, %s150
    %p159 = scmp.eq.s32.totalorder %s24, 0
    %p160 = por %p158, %p159
    %p161 = scmp.ne.s32.totalorder %s149, %s150
    %p162 = scmp.eq.s32.totalorder %s25, 1
    %p163 = por %p161, %p162
    %p165 = scmp.ne.s32.totalorder %s150, %s164
    %p166 = scmp.eq.s32.totalorder %s25, 0
    %p167 = por %p165, %p166
    %s169 = sadd.s32 %s168, 1
    %p172 = scmp.eq.s32.totalorder %s19, 1
    %p173 = scmp.ne.s32.totalorder %s168, %s170
    %p174 = scmp.eq.s32.totalorder %s19, 0
    %p175 = por %p173, %p174
    %p176 = scmp.ne.s32.totalorder %s168, %s170
    %p177 = scmp.eq.s32.totalorder %s24, 1
    %p178 = por %p176, %p177
    %p179 = scmp.ne.s32.totalorder %s170, %s171
    %p180 = scmp.eq.s32.totalorder %s24, 0
    %p181 = por %p179, %p180
    %p182 = scmp.ne.s32.totalorder %s170, %s171
    %p183 = scmp.eq.s32.totalorder %s25, 1
    %p184 = por %p182, %p183
    %p186 = scmp.ne.s32.totalorder %s171, %s185
    %p187 = scmp.eq.s32.totalorder %s25, 0
    %p188 = por %p186, %p187
    %s190 = sadd.s32 %s189, 1
    %p193 = scmp.eq.s32.totalorder %s19, 1
    %p194 = scmp.ne.s32.totalorder %s189, %s191
    %p195 = scmp.eq.s32.totalorder %s19, 0
    %p196 = por %p194, %p195
    %p197 = scmp.ne.s32.totalorder %s189, %s191
    %p198 = scmp.eq.s32.totalorder %s24, 1
    %p199 = por %p197, %p198
    %p200 = scmp.ne.s32.totalorder %s191, %s192
    %p201 = scmp.eq.s32.totalorder %s24, 0
    %p202 = por %p200, %p201
    %p203 = scmp.ne.s32.totalorder %s191, %s192
    %p204 = scmp.eq.s32.totalorder %s25, 1
    %p205 = por %p203, %p204
    %p207 = scmp.ne.s32.totalorder %s192, %s206
    %p208 = scmp.eq.s32.totalorder %s25, 0
    %p209 = por %p207, %p208
    %s211 = sadd.s32 %s210, 1
    %p214 = scmp.eq.s32.totalorder %s19, 1
    %p215 = scmp.ne.s32.totalorder %s210, %s212
    %p216 = scmp.eq.s32.totalorder %s19, 0
    %p217 = por %p215, %p216
    %p218 = scmp.ne.s32.totalorder %s210, %s212
    %p219 = scmp.eq.s32.totalorder %s24, 1
    %p220 = por %p218, %p219
    %p221 = scmp.ne.s32.totalorder %s212, %s213
    %p222 = scmp.eq.s32.totalorder %s24, 0
    %p223 = por %p221, %p222
    %p224 = scmp.ne.s32.totalorder %s212, %s213
    %p225 = scmp.eq.s32.totalorder %s25, 1
    %p226 = por %p224, %p225
    %p228 = scmp.ne.s32.totalorder %s213, %s227
    %p229 = scmp.eq.s32.totalorder %s25, 0
    %p230 = por %p228, %p229
    %s232 = sadd.s32 %s231, 1
    %p235 = scmp.eq.s32.totalorder %s19, 1
    %p236 = scmp.ne.s32.totalorder %s231, %s233
    %p237 = scmp.eq.s32.totalorder %s19, 0
    %p238 = por %p236, %p237
    %p239 = scmp.ne.s32.totalorder %s231, %s233
    %p240 = scmp.eq.s32.totalorder %s24, 1
    %p241 = por %p239, %p240
    %p242 = scmp.ne.s32.totalorder %s233, %s234
    %p243 = scmp.eq.s32.totalorder %s24, 0
    %p244 = por %p242, %p243
    %p245 = scmp.ne.s32.totalorder %s233, %s234
    %p246 = scmp.eq.s32.totalorder %s25, 1
    %p247 = por %p245, %p246
    %p249 = scmp.ne.s32.totalorder %s234, %s248
    %p250 = scmp.eq.s32.totalorder %s25, 0
    %p251 = por %p249, %p250
    %s253 = sadd.s32 %s252, 1
    %p256 = scmp.eq.s32.totalorder %s19, 1
    %p257 = scmp.ne.s32.totalorder %s252, %s254
    %p258 = scmp.eq.s32.totalorder %s19, 0
    %p259 = por %p257, %p258
    %p260 = scmp.ne.s32.totalorder %s252, %s254
    %p261 = scmp.eq.s32.totalorder %s24, 1
    %p262 = por %p260, %p261
    %p263 = scmp.ne.s32.totalorder %s254, %s255
    %p264 = scmp.eq.s32.totalorder %s24, 0
    %p265 = por %p263, %p264
    %p266 = scmp.ne.s32.totalorder %s254, %s255
    %p267 = scmp.eq.s32.totalorder %s25, 1
    %p268 = por %p266, %p267
    %p270 = scmp.ne.s32.totalorder %s255, %s269
    %p271 = scmp.eq.s32.totalorder %s25, 0
    %p272 = por %p270, %p271
    %s274 = sadd.s32 %s273, 1
    %p277 = scmp.eq.s32.totalorder %s19, 1
    %p278 = scmp.ne.s32.totalorder %s273, %s275
    %p279 = scmp.eq.s32.totalorder %s19, 0
    %p280 = por %p278, %p279
    %p281 = scmp.ne.s32.totalorder %s273, %s275
    %p282 = scmp.eq.s32.totalorder %s24, 1
    %p283 = por %p281, %p282
    %p284 = scmp.ne.s32.totalorder %s275, %s276
    %p285 = scmp.eq.s32.totalorder %s24, 0
    %p286 = por %p284, %p285
    %p287 = scmp.ne.s32.totalorder %s275, %s276
    %p288 = scmp.eq.s32.totalorder %s25, 1
    %p289 = por %p287, %p288
    %p291 = scmp.ne.s32.totalorder %s276, %s290
    %p292 = scmp.eq.s32.totalorder %s25, 0
    %p293 = por %p291, %p292
    %s295 = sadd.s32 %s294, 1
    %p298 = scmp.eq.s32.totalorder %s19, 1
    %p299 = scmp.ne.s32.totalorder %s294, %s296
    %p300 = scmp.eq.s32.totalorder %s19, 0
    %p301 = por %p299, %p300
    %p302 = scmp.ne.s32.totalorder %s294, %s296
    %p303 = scmp.eq.s32.totalorder %s24, 1
    %p304 = por %p302, %p303
    %p305 = scmp.ne.s32.totalorder %s296, %s297
    %p306 = scmp.eq.s32.totalorder %s24, 0
    %p307 = por %p305, %p306
    %p308 = scmp.ne.s32.totalorder %s296, %s297
    %p309 = scmp.eq.s32.totalorder %s25, 1
    %p310 = por %p308, %p309
    %p312 = scmp.ne.s32.totalorder %s297, %s311
    %p313 = scmp.eq.s32.totalorder %s25, 0
    %p314 = por %p312, %p313
    %s316 = sadd.s32 %s315, 1
    %p319 = scmp.eq.s32.totalorder %s19, 1
    %p320 = scmp.ne.s32.totalorder %s315, %s317
    %p321 = scmp.eq.s32.totalorder %s19, 0
    %p322 = por %p320, %p321
    %p323 = scmp.ne.s32.totalorder %s315, %s317
    %p324 = scmp.eq.s32.totalorder %s24, 1
    %p325 = por %p323, %p324
    %p326 = scmp.ne.s32.totalorder %s317, %s318
    %p327 = scmp.eq.s32.totalorder %s24, 0
    %p328 = por %p326, %p327
    %p329 = scmp.ne.s32.totalorder %s317, %s318
    %p330 = scmp.eq.s32.totalorder %s25, 1
    %p331 = por %p329, %p330
    %p333 = scmp.ne.s32.totalorder %s318, %s332
    %p334 = scmp.eq.s32.totalorder %s25, 0
    %p335 = por %p333, %p334
    %s336 = ssub.s32 %s26, %s38
    %s337 = ssub.s32 %s27, %s34
    %s338 = sor.u32 %s336, %s337
    %p339 = scmp.eq.s32.totalorder %s338, 0
    %s341 = sadd.s32 %s340, 1
    %s342 = scalar_select %p339, %s340, %s341
    %p345 = pneg %p339
    %p346 = scmp.eq.s32.totalorder %s19, 1
    %p347 = por %p345, %p346
    %p348 = scmp.ne.s32.totalorder %s340, %s343
    %p349 = scmp.eq.s32.totalorder %s19, 0
    %p350 = por %p348, %p349
    %p351 = scmp.ne.s32.totalorder %s340, %s343
    %p352 = scmp.eq.s32.totalorder %s24, 1
    %p353 = por %p351, %p352
    %p354 = scmp.ne.s32.totalorder %s343, %s344
    %p355 = scmp.eq.s32.totalorder %s24, 0
    %p356 = por %p354, %p355
    %p357 = scmp.ne.s32.totalorder %s343, %s344
    %p358 = scmp.eq.s32.totalorder %s25, 1
    %p359 = por %p357, %p358
    %p361 = scmp.ne.s32.totalorder %s344, %s360
    %p362 = scmp.eq.s32.totalorder %s25, 0
    %p363 = por %p361, %p362
    %p364 = scmp.le.s32.totalorder 1, %s19
    %p365 = scmp.lt.s32.totalorder %s19, 3
    %p366 = pnand %p364, %p365
    %p367 = pneg %p366
    // Predicated region
    $region9: #{pixelvit_stage_forward.3} parent=5 // pred_check
      _
    $region10: #{pixelvit_stage_forward.3} parent=5 // pred_check_branch
      %369 = sbr.rel (%p366) target = $region12
    $region11: #{pixelvit_stage_forward.3} parent=5 // pred_region
      %s370 = ssub.s32 %s19, 1
      // Predicated region
      $region13: #{pixelvit_stage_forward.3} parent=11 // pred_check
        %p371 = pneg %p139
      $region14: #{pixelvit_stage_forward.3} parent=11 // pred_check_branch
        %373 = sbr.rel (%p371) target = $region16
      $region15: #{pixelvit_stage_forward.3} parent=11 // pred_region
        %s374 = smul.u32 2, %s29
        %p375 = scmp.lt.s32.totalorder %s374, 1
        %s376 = scalar_select %p375, %s374, 1
        %s377 = smul.addr %s376, 2
        %s378 = scalar_lea.vmem %s3, %s377
        %s379 = smul.u32 2, %s29
      $region16: #{pixelvit_stage_forward.3} parent=11 // pred_fallthru
        _
      // Predicated region
      $region17: #{pixelvit_stage_forward.3} parent=11 // pred_check
        %p380 = pneg %p160
      $region18: #{pixelvit_stage_forward.3} parent=11 // pred_check_branch
        %382 = sbr.rel (%p380) target = $region20
      $region19: #{pixelvit_stage_forward.3} parent=11 // pred_region
        _
      $region20: #{pixelvit_stage_forward.3} parent=11 // pred_fallthru
        _
      // Predicated region
      $region21: #{pixelvit_stage_forward.3} parent=11 // pred_check
        %p383 = pneg %p181
      $region22: #{pixelvit_stage_forward.3} parent=11 // pred_check_branch
        %385 = sbr.rel (%p383) target = $region24
      $region23: #{pixelvit_stage_forward.3} parent=11 // pred_region
        _
      $region24: #{pixelvit_stage_forward.3} parent=11 // pred_fallthru
        _
      // Predicated region
      $region25: #{pixelvit_stage_forward.3} parent=11 // pred_check
        %p386 = pneg %p202
      $region26: #{pixelvit_stage_forward.3} parent=11 // pred_check_branch
        %388 = sbr.rel (%p386) target = $region28
      $region27: #{pixelvit_stage_forward.3} parent=11 // pred_region
        _
      $region28: #{pixelvit_stage_forward.3} parent=11 // pred_fallthru
        _
      // Predicated region
      $region29: #{pixelvit_stage_forward.3} parent=11 // pred_check
        %p389 = pneg %p223
      $region30: #{pixelvit_stage_forward.3} parent=11 // pred_check_branch
        %391 = sbr.rel (%p389) target = $region32
      $region31: #{pixelvit_stage_forward.3} parent=11 // pred_region
        _
      $region32: #{pixelvit_stage_forward.3} parent=11 // pred_fallthru
        _
      // Predicated region
      $region33: #{pixelvit_stage_forward.3} parent=11 // pred_check
        %p392 = pneg %p244
      $region34: #{pixelvit_stage_forward.3} parent=11 // pred_check_branch
        %394 = sbr.rel (%p392) target = $region36
      $region35: #{pixelvit_stage_forward.3} parent=11 // pred_region
        _
      $region36: #{pixelvit_stage_forward.3} parent=11 // pred_fallthru
        _
      // Predicated region
      $region37: #{pixelvit_stage_forward.3} parent=11 // pred_check
        %p395 = pneg %p265
      $region38: #{pixelvit_stage_forward.3} parent=11 // pred_check_branch
        %397 = sbr.rel (%p395) target = $region40
      $region39: #{pixelvit_stage_forward.3} parent=11 // pred_region
        _
      $region40: #{pixelvit_stage_forward.3} parent=11 // pred_fallthru
        _
      // Predicated region
      $region41: #{pixelvit_stage_forward.3} parent=11 // pred_check
        %p398 = pneg %p286
      $region42: #{pixelvit_stage_forward.3} parent=11 // pred_check_branch
        %400 = sbr.rel (%p398) target = $region44
      $region43: #{pixelvit_stage_forward.3} parent=11 // pred_region
        _
      $region44: #{pixelvit_stage_forward.3} parent=11 // pred_fallthru
        _
      // Predicated region
      $region45: #{pixelvit_stage_forward.3} parent=11 // pred_check
        %p401 = pneg %p307
      $region46: #{pixelvit_stage_forward.3} parent=11 // pred_check_branch
        %403 = sbr.rel (%p401) target = $region48
      $region47: #{pixelvit_stage_forward.3} parent=11 // pred_region
        _
      $region48: #{pixelvit_stage_forward.3} parent=11 // pred_fallthru
        _
      // Predicated region
      $region49: #{pixelvit_stage_forward.3} parent=11 // pred_check
        %p404 = pneg %p328
      $region50: #{pixelvit_stage_forward.3} parent=11 // pred_check_branch
        %406 = sbr.rel (%p404) target = $region52
      $region51: #{pixelvit_stage_forward.3} parent=11 // pred_region
        _
      $region52: #{pixelvit_stage_forward.3} parent=11 // pred_fallthru
        _
    $region12: #{pixelvit_stage_forward.3} parent=5 // pred_fallthru
      _
    %p407 = scmp.lt.s32.totalorder %s19, 2
    // Predicated region
    $region53: #{pixelvit_stage_forward.3} parent=5 // pred_check
      %p408 = pneg %p407
    $region54: #{pixelvit_stage_forward.3} parent=5 // pred_check_branch
      %410 = sbr.rel (%p408) target = $region56
    $region55: #{pixelvit_stage_forward.3} parent=5 // pred_region
      // Predicated region
      $region57: #{pixelvit_stage_forward.3} parent=55 // pred_check
        %p411 = pneg %p53
      $region58: #{pixelvit_stage_forward.3} parent=55 // pred_check_branch
        %413 = sbr.rel (%p411) target = $region60
      $region59: #{pixelvit_stage_forward.3} parent=55 // pred_region
        %s414 = smul.u32 2, %s27
        %p415 = scmp.lt.s32.totalorder %s26, 1
        %s416 = scalar_select %p415, %s26, 1
        %p417 = scmp.lt.s32.totalorder %s414, 1
        %s418 = scalar_select %p417, %s414, 1
        %s419 = smul.addr %s416, 2
        %s420 = sadd.s32 %s418, %s419
        %s421 = smul.addr %s420, 2
        %s422 = scalar_lea.vmem %s0, %s421
        %s423 = smul.u32 2, %s27
      $region60: #{pixelvit_stage_forward.3} parent=55 // pred_fallthru
        _
      // Predicated region
      $region61: #{pixelvit_stage_forward.3} parent=55 // pred_check
        %p424 = pneg %p79
      $region62: #{pixelvit_stage_forward.3} parent=55 // pred_check_branch
        %426 = sbr.rel (%p424) target = $region64
      $region63: #{pixelvit_stage_forward.3} parent=55 // pred_region
        %p427 = scmp.lt.s32.totalorder %s26, 1
        %s428 = scalar_select %p427, %s26, 1
        %s429 = smul.addr %s428, 2
        %s430 = smul.addr %s429, 2
        %s431 = scalar_lea.vmem %s1, %s430
      $region64: #{pixelvit_stage_forward.3} parent=55 // pred_fallthru
        _
      // Predicated region
      $region65: #{pixelvit_stage_forward.3} parent=55 // pred_check
        %p432 = pneg %p107
      $region66: #{pixelvit_stage_forward.3} parent=55 // pred_check_branch
        %434 = sbr.rel (%p432) target = $region68
      $region67: #{pixelvit_stage_forward.3} parent=55 // pred_region
        %s435 = smul.u32 2, %s27
        %p436 = scmp.lt.s32.totalorder %s26, 1
        %s437 = scalar_select %p436, %s26, 1
        %p438 = scmp.lt.s32.totalorder %s435, 1
        %s439 = scalar_select %p438, %s435, 1
        %s440 = smul.addr %s437, 8
        %s441 = sadd.s32 %s439, %s440
        %s442 = smul.addr %s441, 4
        %s443 = scalar_lea.vmem %s2, %s442
        %s444 = smul.u32 2, %s27
      $region68: #{pixelvit_stage_forward.3} parent=55 // pred_fallthru
        _
    $region56: #{pixelvit_stage_forward.3} parent=5 // pred_fallthru
      _
    %p445 = scmp.le.s32.totalorder 1, %s19
    %p446 = scmp.lt.s32.totalorder %s19, 3
    %p447 = pnand %p445, %p446
    %p448 = pneg %p447
    // Predicated region
    $region69: #{pixelvit_stage_forward.3} parent=5 // pred_check
      _
    $region70: #{pixelvit_stage_forward.3} parent=5 // pred_check_branch
      %450 = sbr.rel (%p447) target = $region72
    $region71: #{pixelvit_stage_forward.3} parent=5 // pred_region
      %s451 = ssub.s32 %s19, 1
      %s452 = smul.u32 2, %s29
      %p453 = scmp.lt.s32.totalorder %s28, 1
      %s454 = scalar_select %p453, %s28, 1
      %p455 = scmp.lt.s32.totalorder %s452, 1
      %s456 = scalar_select %p455, %s452, 1
      %s457 = smul.addr %s454, 2
      %s458 = sadd.s32 %s456, %s457
      %s459 = smul.addr %s458, 2
      %s460 = scalar_lea.vmem %s0, %s459
      %p461 = pneg %p59
      %p462 = pneg %p56
      %p463 = scmp.lt.s32.totalorder %s28, 1
      %s464 = scalar_select %p463, %s28, 1
      %s465 = smul.addr %s464, 2
      %s466 = smul.addr %s465, 2
      %s467 = scalar_lea.vmem %s1, %s466
      %p468 = pneg %p85
      %p469 = pneg %p82
      %s470 = smul.u32 2, %s29
      %p471 = scmp.lt.s32.totalorder %s28, 1
      %s472 = scalar_select %p471, %s28, 1
      %p473 = scmp.lt.s32.totalorder %s470, 1
      %s474 = scalar_select %p473, %s470, 1
      %s475 = smul.addr %s472, 8
      %s476 = sadd.s32 %s474, %s475
      %s477 = smul.addr %s476, 4
      %s478 = scalar_lea.vmem %s2, %s477
      %p479 = pneg %p113
      %p480 = pneg %p110
      %s481 = smul.u32 2, %s29
      %p482 = scmp.lt.s32.totalorder %s481, 1
      %s483 = scalar_select %p482, %s481, 1
      %s484 = smul.addr %s483, 2
      %s485 = scalar_lea.vmem %s3, %s484
      %p486 = pneg %p139
      %p487 = pneg %p136
      %p488 = pneg %p160
      %p489 = pneg %p157
      %p490 = pneg %p181
      %p491 = pneg %p178
      %p492 = pneg %p202
      %p493 = pneg %p199
      %p494 = pneg %p223
      %p495 = pneg %p220
      %p496 = pneg %p244
      %p497 = pneg %p241
      %p498 = pneg %p265
      %p499 = pneg %p262
      %p500 = pneg %p286
      %p501 = pneg %p283
      %p502 = pneg %p307
      %p503 = pneg %p304
      %p504 = pneg %p328
      %p505 = pneg %p325
      %p506 = pneg %p356
      %p507 = pneg %p353
      %s508 = smul.u32 2, %s29
      %p509 = scmp.lt.s32.totalorder %s28, 1
      %s510 = scalar_select %p509, %s28, 1
      %p511 = scmp.lt.s32.totalorder %s508, 1
      %s512 = scalar_select %p511, %s508, 1
      %s513 = smul.addr %s510, 2
      %s514 = sadd.s32 %s512, %s513
      %s515 = smul.addr %s514, 4
      %s516 = scalar_lea.vmem %s13, %s515
      %s517 = smul.u32 2, %s29
      %p518 = scmp.lt.s32.totalorder %s28, 1
      %s519 = scalar_select %p518, %s28, 1
      %p520 = scmp.lt.s32.totalorder %s517, 1
      %s521 = scalar_select %p520, %s517, 1
      %s522 = smul.addr %s519, 2
      %s523 = sadd.s32 %s521, %s522
      %s524 = smul.addr %s523, 2
      %s525 = scalar_lea.vmem %s0, %s524
      %s526 = smul.u32 2, %s29
      %p527 = scmp.lt.s32.totalorder %s28, 1
      %s528 = scalar_select %p527, %s28, 1
      %s529 = smul.addr %s528, 2
      %s530 = smul.addr %s529, 2
      %s531 = scalar_lea.vmem %s1, %s530
      %s532 = smul.u32 2, %s29
      %p533 = scmp.lt.s32.totalorder %s28, 1
      %s534 = scalar_select %p533, %s28, 1
      %p535 = scmp.lt.s32.totalorder %s532, 1
      %s536 = scalar_select %p535, %s532, 1
      %s537 = smul.addr %s534, 8
      %s538 = sadd.s32 %s536, %s537
      %s539 = smul.addr %s538, 4
      %s540 = scalar_lea.vmem %s2, %s539
      %s541 = smul.u32 2, %s29
      %s542 = smul.u32 2, %s29
      %p543 = scmp.lt.s32.totalorder %s542, 1
      %s544 = scalar_select %p543, %s542, 1
      %s545 = smul.addr %s544, 2
      %s546 = scalar_lea.vmem %s3, %s545
      %s547 = smul.u32 2, %s29
      %s548 = smul.u32 2, %s29
      %p549 = scmp.lt.s32.totalorder %s28, 1
      %s550 = scalar_select %p549, %s28, 1
      %p551 = scmp.lt.s32.totalorder %s548, 1
      %s552 = scalar_select %p551, %s548, 1
      %s553 = smul.addr %s550, 2
      %s554 = sadd.s32 %s552, %s553
      %s555 = smul.addr %s554, 4
      %s556 = scalar_lea.vmem %s13, %s555
      %s557 = smul.u32 2, %s29
      %v559 = vld [vmem:[%s525] sm:$0xf]
      %v560 = vld [vmem:[%s4] sm:$0xf]
      %v561 = vld [vmem:[%s4 + $0x4] sm:$0xf]
      %v562 = vld [vmem:[%s4 + $0x8] sm:$0xf]
      %v563 = vld [vmem:[%s4 + $0xc] sm:$0xf]
      %v564 = vld [vmem:[%s11] sm:$0xff]
      %v565 = vld [vmem:[%s11 + $0x8] sm:$0xff]
      %v566 = vld [vmem:[%s11 + $0x10] sm:$0xff]
      %v567 = vld [vmem:[%s11 + $0x18] sm:$0xff]
      %569 = vset.pattern.permute.xlu0 0
      %570 = vperm.xlu0 %569, %v564
      %v571 = vpop.permute.xlu0 %570
      %574 = vset.pattern.permute.xlu0 0
      %575 = vperm.xlu0 %574, %v565
      %v576 = vpop.permute.xlu0 %575
      %579 = vset.pattern.permute.xlu0 0
      %580 = vperm.xlu0 %579, %v566
      %v581 = vpop.permute.xlu0 %580
      %584 = vset.pattern.permute.xlu0 0
      %585 = vperm.xlu0 %584, %v567
      %v586 = vpop.permute.xlu0 %585
      %v592 = vunpack.c.l.b16 %v560
      %v593 = vunpack.c.l.b16 %v561
      %v594 = vunpack.c.l.b16 %v562
      %v595 = vunpack.c.l.b16 %v563
      %v596 = vpack.c.b16 %v593, %v592
      %v597 = vpack.c.b16 %v595, %v594
      %v600 = vunpack.c.l.s4 1983009808
      %v601 = vunpack.c.0.s8 %v600
      %v602 = vlaneseq
      %v603 = vshrl.u32 %v602, 7
      %v604 = vsub.s32 %v601, %v603
      %v605 = vrot.slane %v559, %v604
      %v606 = vcombine.high %v605, %v605
      %vm607 = vcmask 31744
      %v609 = vsel %vm607, %v596, 0
      %v612 = vsel %vm607, %v597, 0
      %vm614 = vcmask 1041408
      %v616 = vsel %vm614, %v605, 0
      %v619 = vsel %vm614, %v606, 0
      %621 = vmatprep.subr.bf16.mxu0 0
      %622 = vmatpush1.bf16.msra.mxu0 0
      %623 = vmatprep.subr.bf16.mxu0 0
      %624 = vmatpush1.bf16.msra.mxu0 0
      %625 = vmatprep.subr.bf16.mxu0 0
      %626 = vmatpush1.bf16.msra.mxu0 0
      %627 = vmatprep.subr.bf16.mxu0 0
      %628 = vmatpush1.bf16.msra.mxu0 0
      %629 = vmatprep.subr.bf16.mxu0 0
      %630 = vmatpush1.bf16.msra.mxu0 0
      %631 = vmatprep.subr.bf16.mxu0 0
      %632 = vmatpush1.bf16.msra.mxu0 0
      %633 = vmatprep.subr.bf16.mxu0 0
      %634 = vmatpush1.bf16.msra.mxu0 0
      %635 = vmatprep.subr.bf16.mxu0 %v619
      %636 = vmatpush1.bf16.msra.mxu0 %v616
      %637 = vmatprep.subr.bf16.mxu0 0
      %638 = vmatpush2.bf16.msra.mxu0 0
      %639 = vmatprep.subr.bf16.mxu0 0
      %640 = vmatpush2.bf16.msra.mxu0 0
      %641 = vmatprep.subr.bf16.mxu0 0
      %642 = vmatpush2.bf16.msra.mxu0 0
      %643 = vmatprep.subr.bf16.mxu0 0
      %644 = vmatpush2.bf16.msra.mxu0 0
      %645 = vmatprep.subr.bf16.mxu0 0
      %646 = vmatpush2.bf16.msra.mxu0 0
      %647 = vmatprep.subr.bf16.mxu0 0
      %648 = vmatpush2.bf16.msra.mxu0 0
      %649 = vmatprep.subr.bf16.mxu0 0
      %650 = vmatpush2.bf16.msra.mxu0 0
      %651 = vmatprep.subr.bf16.mxu0 0
      %652 = vmatpush2.bf16.msra.mxu0 0
      %653 = vmatprep.mubr.bf16.mxu0 0
      %654 = vmatmul.mubr.bf16.gmra.mxu0 %v609
      %v655 = vpop.f32.mrf.mxu0
      %v656 = vadd.f32 %v571, %v655
      %v657 = vpop.f32.mrf.mxu0
      %v658 = vadd.f32 %v571, %v657
      %v659 = vpop.f32.mrf.mxu0
      %v660 = vadd.f32 %v576, %v659
      %v661 = vpop.f32.mrf.mxu0
      %v662 = vadd.f32 %v576, %v661
      %663 = vmatprep.mubr.bf16.mxu0 0
      %664 = vmatmul.mubr.bf16.gmra.mxu0 %v612
      %v665 = vpop.f32.mrf.mxu0
      %v666 = vadd.f32 %v581, %v665
      %v667 = vpop.f32.mrf.mxu0
      %v668 = vadd.f32 %v581, %v667
      %v669 = vpop.f32.mrf.mxu0
      %v670 = vadd.f32 %v586, %v669
      %v671 = vpop.f32.mrf.mxu0
      %v672 = vadd.f32 %v586, %v671
      %673 = vdwg.mxu0
      %v674 = vmul.f32 %v656, 0.5
      %v675 = vmul.f32 %v658, 0.5
      %v676 = vmul.f32 %v660, 0.5
      %v677 = vmul.f32 %v662, 0.5
      %v678 = vmul.f32 %v666, 0.5
      %v679 = vmul.f32 %v668, 0.5
      %v680 = vmul.f32 %v670, 0.5
      %v681 = vmul.f32 %v672, 0.5
      %v682 = vmul.f32 %v656, 0.044715
      %v683 = vmul.f32 %v658, 0.044715
      %v684 = vmul.f32 %v660, 0.044715
      %v685 = vmul.f32 %v662, 0.044715
      %v686 = vmul.f32 %v666, 0.044715
      %v687 = vmul.f32 %v668, 0.044715
      %v688 = vmul.f32 %v670, 0.044715
      %v689 = vmul.f32 %v672, 0.044715
      %v690 = vmul.f32 %v682, %v656
      %v691 = vmul.f32 %v683, %v658
      %v692 = vmul.f32 %v684, %v660
      %v693 = vmul.f32 %v685, %v662
      %v694 = vmul.f32 %v686, %v666
      %v695 = vmul.f32 %v687, %v668
      %v696 = vmul.f32 %v688, %v670
      %v697 = vmul.f32 %v689, %v672
      %v698 = vmul.f32 %v690, %v656
      %v699 = vmul.f32 %v691, %v658
      %v700 = vmul.f32 %v692, %v660
      %v701 = vmul.f32 %v693, %v662
      %v702 = vmul.f32 %v694, %v666
      %v703 = vmul.f32 %v695, %v668
      %v704 = vmul.f32 %v696, %v670
      %v705 = vmul.f32 %v697, %v672
      %v706 = vadd.f32 %v656, %v698
      %v707 = vadd.f32 %v658, %v699
      %v708 = vadd.f32 %v660, %v700
      %v709 = vadd.f32 %v662, %v701
      %v710 = vadd.f32 %v666, %v702
      %v711 = vadd.f32 %v668, %v703
      %v712 = vadd.f32 %v670, %v704
      %v713 = vadd.f32 %v672, %v705
      %v714 = vmul.f32 %v706, 0.7978846
      %v715 = vmul.f32 %v707, 0.7978846
      %v716 = vmul.f32 %v708, 0.7978846
      %v717 = vmul.f32 %v709, 0.7978846
      %v718 = vmul.f32 %v710, 0.7978846
      %v719 = vmul.f32 %v711, 0.7978846
      %v720 = vmul.f32 %v712, 0.7978846
      %v721 = vmul.f32 %v713, 0.7978846
      %v722 = vtanh.pop %v714
      %v723 = vtanh.pop %v715
      %v724 = vtanh.pop %v716
      %v725 = vtanh.pop %v717
      %v726 = vtanh.pop %v718
      %v727 = vtanh.pop %v719
      %v728 = vtanh.pop %v720
      %v729 = vtanh.pop %v721
      %v730 = vadd.f32 %v722, 1.0
      %v731 = vadd.f32 %v723, 1.0
      %v732 = vadd.f32 %v724, 1.0
      %v733 = vadd.f32 %v725, 1.0
      %v734 = vadd.f32 %v726, 1.0
      %v735 = vadd.f32 %v727, 1.0
      %v736 = vadd.f32 %v728, 1.0
      %v737 = vadd.f32 %v729, 1.0
      %v738 = vmul.f32 %v674, %v730
      %v739 = vmul.f32 %v675, %v731
      %v740 = vmul.f32 %v676, %v732
      %v741 = vmul.f32 %v677, %v733
      %v742 = vmul.f32 %v678, %v734
      %v743 = vmul.f32 %v679, %v735
      %v744 = vmul.f32 %v680, %v736
      %v745 = vmul.f32 %v681, %v737
      %v746 = vld [vmem:[%s540] sm:$0xff]
      %v747 = vld [vmem:[%s540 + $0x8] sm:$0xff]
      %v748 = vld [vmem:[%s540 + $0x10] sm:$0xff]
      %v749 = vld [vmem:[%s540 + $0x18] sm:$0xff]
      %v750 = vunpack.c.l.bf16 %v746
      %v751 = vunpack.c.h.bf16 %v746
      %v752 = vunpack.c.l.bf16 %v747
      %v753 = vunpack.c.h.bf16 %v747
      %v754 = vunpack.c.l.bf16 %v748
      %v755 = vunpack.c.h.bf16 %v748
      %v756 = vunpack.c.l.bf16 %v749
      %v757 = vunpack.c.h.bf16 %v749
      %v758 = vadd.f32 %v738, %v750
      %v759 = vadd.f32 %v739, %v751
      %v760 = vadd.f32 %v740, %v752
      %v761 = vadd.f32 %v741, %v753
      %v762 = vadd.f32 %v742, %v754
      %v763 = vadd.f32 %v743, %v755
      %v764 = vadd.f32 %v744, %v756
      %v765 = vadd.f32 %v745, %v757
      %v766 = vld [vmem:[%s5] sm:$0xf]
      %v767 = vld [vmem:[%s5 + $0x4] sm:$0xf]
      %v768 = vld [vmem:[%s5 + $0x8] sm:$0xf]
      %v769 = vld [vmem:[%s5 + $0xc] sm:$0xf]
      %v770 = vpack.c.bf16 %v760, %v758
      %v771 = vpack.c.bf16 %v761, %v759
      %v772 = vpack.c.bf16 %v764, %v762
      %v773 = vpack.c.bf16 %v765, %v763
      %v774 = vld [vmem:[%s11] sm:$0xff]
      %v775 = vld [vmem:[%s11 + $0x8] sm:$0xff]
      %v776 = vld [vmem:[%s11 + $0x10] sm:$0xff]
      %v777 = vld [vmem:[%s11 + $0x18] sm:$0xff]
      %779 = vset.pattern.permute.xlu0 1
      %780 = vperm.xlu0 %779, %v774
      %v781 = vpop.permute.xlu0 %780
      %784 = vset.pattern.permute.xlu0 1
      %785 = vperm.xlu0 %784, %v775
      %v786 = vpop.permute.xlu0 %785
      %789 = vset.pattern.permute.xlu0 1
      %790 = vperm.xlu0 %789, %v776
      %v791 = vpop.permute.xlu0 %790
      %794 = vset.pattern.permute.xlu0 1
      %795 = vperm.xlu0 %794, %v777
      %v796 = vpop.permute.xlu0 %795
      %v802 = vunpack.c.l.b16 %v766
      %v803 = vunpack.c.l.b16 %v767
      %v804 = vunpack.c.l.b16 %v768
      %v805 = vunpack.c.l.b16 %v769
      %v806 = vpack.c.b16 %v803, %v802
      %v807 = vpack.c.b16 %v805, %v804
      %vm808 = vcmask 261120
      %v810 = vsel %vm808, %v806, 0
      %v813 = vsel %vm808, %v807, 0
      %815 = vmatprep.subr.bf16.mxu0 0
      %816 = vmatpush1.bf16.msra.mxu0 0
      %817 = vmatprep.subr.bf16.mxu0 0
      %818 = vmatpush1.bf16.msra.mxu0 0
      %819 = vmatprep.subr.bf16.mxu0 0
      %820 = vmatpush1.bf16.msra.mxu0 0
      %821 = vmatprep.subr.bf16.mxu0 0
      %822 = vmatpush1.bf16.msra.mxu0 0
      %823 = vmatprep.subr.bf16.mxu0 0
      %824 = vmatpush1.bf16.msra.mxu0 0
      %825 = vmatprep.subr.bf16.mxu0 0
      %826 = vmatpush1.bf16.msra.mxu0 0
      %827 = vmatprep.subr.bf16.mxu0 %v773
      %828 = vmatpush1.bf16.msra.mxu0 %v772
      %829 = vmatprep.subr.bf16.mxu0 %v771
      %830 = vmatpush1.bf16.msra.mxu0 %v770
      %831 = vmatprep.subr.bf16.mxu0 0
      %832 = vmatpush2.bf16.msra.mxu0 0
      %833 = vmatprep.subr.bf16.mxu0 0
      %834 = vmatpush2.bf16.msra.mxu0 0
      %835 = vmatprep.subr.bf16.mxu0 0
      %836 = vmatpush2.bf16.msra.mxu0 0
      %837 = vmatprep.subr.bf16.mxu0 0
      %838 = vmatpush2.bf16.msra.mxu0 0
      %839 = vmatprep.subr.bf16.mxu0 0
      %840 = vmatpush2.bf16.msra.mxu0 0
      %841 = vmatprep.subr.bf16.mxu0 0
      %842 = vmatpush2.bf16.msra.mxu0 0
      %843 = vmatprep.subr.bf16.mxu0 0
      %844 = vmatpush2.bf16.msra.mxu0 0
      %845 = vmatprep.subr.bf16.mxu0 0
      %846 = vmatpush2.bf16.msra.mxu0 0
      %847 = vmatprep.mubr.bf16.mxu0 0
      %848 = vmatmul.mubr.bf16.gmra.mxu0 %v810
      %v849 = vpop.f32.mrf.mxu0
      %v850 = vadd.f32 %v781, %v849
      %v851 = vpop.f32.mrf.mxu0
      %v852 = vadd.f32 %v781, %v851
      %v853 = vpop.f32.mrf.mxu0
      %v854 = vadd.f32 %v786, %v853
      %v855 = vpop.f32.mrf.mxu0
      %v856 = vadd.f32 %v786, %v855
      %857 = vmatprep.mubr.bf16.mxu0 0
      %858 = vmatmul.mubr.bf16.gmra.mxu0 %v813
      %v859 = vpop.f32.mrf.mxu0
      %v860 = vadd.f32 %v791, %v859
      %v861 = vpop.f32.mrf.mxu0
      %v862 = vadd.f32 %v791, %v861
      %v863 = vpop.f32.mrf.mxu0
      %v864 = vadd.f32 %v796, %v863
      %v865 = vpop.f32.mrf.mxu0
      %v866 = vadd.f32 %v796, %v865
      %867 = vdwg.mxu0
      %v868 = vmul.f32 %v850, 0.5
      %v869 = vmul.f32 %v852, 0.5
      %v870 = vmul.f32 %v854, 0.5
      %v871 = vmul.f32 %v856, 0.5
      %v872 = vmul.f32 %v860, 0.5
      %v873 = vmul.f32 %v862, 0.5
      %v874 = vmul.f32 %v864, 0.5
      %v875 = vmul.f32 %v866, 0.5
      %v876 = vmul.f32 %v850, 0.044715
      %v877 = vmul.f32 %v852, 0.044715
      %v878 = vmul.f32 %v854, 0.044715
      %v879 = vmul.f32 %v856, 0.044715
      %v880 = vmul.f32 %v860, 0.044715
      %v881 = vmul.f32 %v862, 0.044715
      %v882 = vmul.f32 %v864, 0.044715
      %v883 = vmul.f32 %v866, 0.044715
      %v884 = vmul.f32 %v876, %v850
      %v885 = vmul.f32 %v877, %v852
      %v886 = vmul.f32 %v878, %v854
      %v887 = vmul.f32 %v879, %v856
      %v888 = vmul.f32 %v880, %v860
      %v889 = vmul.f32 %v881, %v862
      %v890 = vmul.f32 %v882, %v864
      %v891 = vmul.f32 %v883, %v866
      %v892 = vmul.f32 %v884, %v850
      %v893 = vmul.f32 %v885, %v852
      %v894 = vmul.f32 %v886, %v854
      %v895 = vmul.f32 %v887, %v856
      %v896 = vmul.f32 %v888, %v860
      %v897 = vmul.f32 %v889, %v862
      %v898 = vmul.f32 %v890, %v864
      %v899 = vmul.f32 %v891, %v866
      %v900 = vadd.f32 %v850, %v892
      %v901 = vadd.f32 %v852, %v893
      %v902 = vadd.f32 %v854, %v894
      %v903 = vadd.f32 %v856, %v895
      %v904 = vadd.f32 %v860, %v896
      %v905 = vadd.f32 %v862, %v897
      %v906 = vadd.f32 %v864, %v898
      %v907 = vadd.f32 %v866, %v899
      %v908 = vmul.f32 %v900, 0.7978846
      %v909 = vmul.f32 %v901, 0.7978846
      %v910 = vmul.f32 %v902, 0.7978846
      %v911 = vmul.f32 %v903, 0.7978846
      %v912 = vmul.f32 %v904, 0.7978846
      %v913 = vmul.f32 %v905, 0.7978846
      %v914 = vmul.f32 %v906, 0.7978846
      %v915 = vmul.f32 %v907, 0.7978846
      %v916 = vtanh.pop %v908
      %v917 = vtanh.pop %v909
      %v918 = vtanh.pop %v910
      %v919 = vtanh.pop %v911
      %v920 = vtanh.pop %v912
      %v921 = vtanh.pop %v913
      %v922 = vtanh.pop %v914
      %v923 = vtanh.pop %v915
      %v924 = vadd.f32 %v916, 1.0
      %v925 = vadd.f32 %v917, 1.0
      %v926 = vadd.f32 %v918, 1.0
      %v927 = vadd.f32 %v919, 1.0
      %v928 = vadd.f32 %v920, 1.0
      %v929 = vadd.f32 %v921, 1.0
      %v930 = vadd.f32 %v922, 1.0
      %v931 = vadd.f32 %v923, 1.0
      %v932 = vmul.f32 %v868, %v924
      %v933 = vmul.f32 %v869, %v925
      %v934 = vmul.f32 %v870, %v926
      %v935 = vmul.f32 %v871, %v927
      %v936 = vmul.f32 %v872, %v928
      %v937 = vmul.f32 %v873, %v929
      %v938 = vmul.f32 %v874, %v930
      %v939 = vmul.f32 %v875, %v931
      %v940 = vld [vmem:[%s6] sm:$0xf]
      %v941 = vld [vmem:[%s6 + $0x4] sm:$0xf]
      %v942 = vld [vmem:[%s6 + $0x8] sm:$0xf]
      %v943 = vld [vmem:[%s6 + $0xc] sm:$0xf]
      %v944 = vpack.c.bf16 %v934, %v932
      %v945 = vpack.c.bf16 %v935, %v933
      %v946 = vpack.c.bf16 %v938, %v936
      %v947 = vpack.c.bf16 %v939, %v937
      %948 = vset.pattern.permute.xlu0 2
      %949 = vperm.xlu0 %948, %v774
      %v950 = vpop.permute.xlu0 %949
      %952 = vset.pattern.permute.xlu0 2
      %953 = vperm.xlu0 %952, %v775
      %v954 = vpop.permute.xlu0 %953
      %956 = vset.pattern.permute.xlu0 2
      %957 = vperm.xlu0 %956, %v776
      %v958 = vpop.permute.xlu0 %957
      %960 = vset.pattern.permute.xlu0 2
      %961 = vperm.xlu0 %960, %v777
      %v962 = vpop.permute.xlu0 %961
      %v968 = vunpack.c.l.b16 %v940
      %v969 = vunpack.c.l.b16 %v941
      %v970 = vunpack.c.l.b16 %v942
      %v971 = vunpack.c.l.b16 %v943
      %v972 = vpack.c.b16 %v969, %v968
      %v973 = vpack.c.b16 %v971, %v970
      %v975 = vsel %vm808, %v972, 0
      %v978 = vsel %vm808, %v973, 0
      %980 = vmatprep.subr.bf16.mxu0 0
      %981 = vmatpush1.bf16.msra.mxu0 0
      %982 = vmatprep.subr.bf16.mxu0 0
      %983 = vmatpush1.bf16.msra.mxu0 0
      %984 = vmatprep.subr.bf16.mxu0 0
      %985 = vmatpush1.bf16.msra.mxu0 0
      %986 = vmatprep.subr.bf16.mxu0 0
      %987 = vmatpush1.bf16.msra.mxu0 0
      %988 = vmatprep.subr.bf16.mxu0 0
      %989 = vmatpush1.bf16.msra.mxu0 0
      %990 = vmatprep.subr.bf16.mxu0 0
      %991 = vmatpush1.bf16.msra.mxu0 0
      %992 = vmatprep.subr.bf16.mxu0 %v947
      %993 = vmatpush1.bf16.msra.mxu0 %v946
      %994 = vmatprep.subr.bf16.mxu0 %v945
      %995 = vmatpush1.bf16.msra.mxu0 %v944
      %996 = vmatprep.subr.bf16.mxu0 0
      %997 = vmatpush2.bf16.msra.mxu0 0
      %998 = vmatprep.subr.bf16.mxu0 0
      %999 = vmatpush2.bf16.msra.mxu0 0
      %1000 = vmatprep.subr.bf16.mxu0 0
      %1001 = vmatpush2.bf16.msra.mxu0 0
      %1002 = vmatprep.subr.bf16.mxu0 0
      %1003 = vmatpush2.bf16.msra.mxu0 0
      %1004 = vmatprep.subr.bf16.mxu0 0
      %1005 = vmatpush2.bf16.msra.mxu0 0
      %1006 = vmatprep.subr.bf16.mxu0 0
      %1007 = vmatpush2.bf16.msra.mxu0 0
      %1008 = vmatprep.subr.bf16.mxu0 0
      %1009 = vmatpush2.bf16.msra.mxu0 0
      %1010 = vmatprep.subr.bf16.mxu0 0
      %1011 = vmatpush2.bf16.msra.mxu0 0
      %1012 = vmatprep.mubr.bf16.mxu0 0
      %1013 = vmatmul.mubr.bf16.gmra.mxu0 %v975
      %v1014 = vpop.f32.mrf.mxu0
      %v1015 = vadd.f32 %v950, %v1014
      %v1016 = vpop.f32.mrf.mxu0
      %v1017 = vadd.f32 %v950, %v1016
      %v1018 = vpop.f32.mrf.mxu0
      %v1019 = vadd.f32 %v954, %v1018
      %v1020 = vpop.f32.mrf.mxu0
      %v1021 = vadd.f32 %v954, %v1020
      %1022 = vmatprep.mubr.bf16.mxu0 0
      %1023 = vmatmul.mubr.bf16.gmra.mxu0 %v978
      %v1024 = vpop.f32.mrf.mxu0
      %v1025 = vadd.f32 %v958, %v1024
      %v1026 = vpop.f32.mrf.mxu0
      %v1027 = vadd.f32 %v958, %v1026
      %v1028 = vpop.f32.mrf.mxu0
      %v1029 = vadd.f32 %v962, %v1028
      %v1030 = vpop.f32.mrf.mxu0
      %v1031 = vadd.f32 %v962, %v1030
      %1032 = vdwg.mxu0
      %v1033 = vadd.f32 %v1015, %v738
      %v1034 = vadd.f32 %v1017, %v739
      %v1035 = vadd.f32 %v1019, %v740
      %v1036 = vadd.f32 %v1021, %v741
      %v1037 = vadd.f32 %v1025, %v742
      %v1038 = vadd.f32 %v1027, %v743
      %v1039 = vadd.f32 %v1029, %v744
      %v1040 = vadd.f32 %v1031, %v745
      %v1041 = vld [vmem:[%s7] sm:$0xf]
      %v1042 = vld [vmem:[%s7 + $0x4] sm:$0xf]
      %v1043 = vpack.c.bf16 %v1035, %v1033
      %v1044 = vpack.c.bf16 %v1036, %v1034
      %v1045 = vpack.c.bf16 %v1039, %v1037
      %v1046 = vpack.c.bf16 %v1040, %v1038
      %v1047 = vld [vmem:[%s11] sm:$0xff]
      %v1048 = vld [vmem:[%s11 + $0x8] sm:$0xff]
      %1050 = vset.pattern.permute.xlu0 3
      %1051 = vperm.xlu0 %1050, %v1047
      %v1052 = vpop.permute.xlu0 %1051
      %1055 = vset.pattern.permute.xlu0 3
      %1056 = vperm.xlu0 %1055, %v1048
      %v1057 = vpop.permute.xlu0 %1056
      %v1061 = vunpack.c.l.b16 %v1041
      %v1062 = vunpack.c.l.b16 %v1042
      %v1063 = vpack.c.b16 %v1062, %v1061
      %v1065 = vsel %vm808, %v1063, 0
      %1067 = vmatprep.subr.bf16.mxu0 0
      %1068 = vmatpush1.bf16.msra.mxu0 0
      %1069 = vmatprep.subr.bf16.mxu0 0
      %1070 = vmatpush1.bf16.msra.mxu0 0
      %1071 = vmatprep.subr.bf16.mxu0 0
      %1072 = vmatpush1.bf16.msra.mxu0 0
      %1073 = vmatprep.subr.bf16.mxu0 0
      %1074 = vmatpush1.bf16.msra.mxu0 0
      %1075 = vmatprep.subr.bf16.mxu0 0
      %1076 = vmatpush1.bf16.msra.mxu0 0
      %1077 = vmatprep.subr.bf16.mxu0 0
      %1078 = vmatpush1.bf16.msra.mxu0 0
      %1079 = vmatprep.subr.bf16.mxu0 %v1046
      %1080 = vmatpush1.bf16.msra.mxu0 %v1045
      %1081 = vmatprep.subr.bf16.mxu0 %v1044
      %1082 = vmatpush1.bf16.msra.mxu0 %v1043
      %1083 = vmatprep.subr.bf16.mxu0 0
      %1084 = vmatpush2.bf16.msra.mxu0 0
      %1085 = vmatprep.subr.bf16.mxu0 0
      %1086 = vmatpush2.bf16.msra.mxu0 0
      %1087 = vmatprep.subr.bf16.mxu0 0
      %1088 = vmatpush2.bf16.msra.mxu0 0
      %1089 = vmatprep.subr.bf16.mxu0 0
      %1090 = vmatpush2.bf16.msra.mxu0 0
      %1091 = vmatprep.subr.bf16.mxu0 0
      %1092 = vmatpush2.bf16.msra.mxu0 0
      %1093 = vmatprep.subr.bf16.mxu0 0
      %1094 = vmatpush2.bf16.msra.mxu0 0
      %1095 = vmatprep.subr.bf16.mxu0 0
      %1096 = vmatpush2.bf16.msra.mxu0 0
      %1097 = vmatprep.subr.bf16.mxu0 0
      %1098 = vmatpush2.bf16.msra.mxu0 0
      %1099 = vmatprep.mubr.bf16.mxu0 0
      %1100 = vmatmul.mubr.bf16.gmra.mxu0 %v1065
      %v1101 = vpop.f32.mrf.mxu0
      %v1102 = vadd.f32 %v1052, %v1101
      %v1103 = vpop.f32.mrf.mxu0
      %v1104 = vadd.f32 %v1052, %v1103
      %v1105 = vpop.f32.mrf.mxu0
      %v1106 = vadd.f32 %v1057, %v1105
      %v1107 = vpop.f32.mrf.mxu0
      %v1108 = vadd.f32 %v1057, %v1107
      %1109 = vdwg.mxu0
      %v1110 = vmul.f32 %v1102, 0.5
      %v1111 = vmul.f32 %v1104, 0.5
      %v1112 = vmul.f32 %v1106, 0.5
      %v1113 = vmul.f32 %v1108, 0.5
      %v1114 = vmul.f32 %v1102, 0.044715
      %v1115 = vmul.f32 %v1104, 0.044715
      %v1116 = vmul.f32 %v1106, 0.044715
      %v1117 = vmul.f32 %v1108, 0.044715
      %v1118 = vmul.f32 %v1114, %v1102
      %v1119 = vmul.f32 %v1115, %v1104
      %v1120 = vmul.f32 %v1116, %v1106
      %v1121 = vmul.f32 %v1117, %v1108
      %v1122 = vmul.f32 %v1118, %v1102
      %v1123 = vmul.f32 %v1119, %v1104
      %v1124 = vmul.f32 %v1120, %v1106
      %v1125 = vmul.f32 %v1121, %v1108
      %v1126 = vadd.f32 %v1102, %v1122
      %v1127 = vadd.f32 %v1104, %v1123
      %v1128 = vadd.f32 %v1106, %v1124
      %v1129 = vadd.f32 %v1108, %v1125
      %v1130 = vmul.f32 %v1126, 0.7978846
      %v1131 = vmul.f32 %v1127, 0.7978846
      %v1132 = vmul.f32 %v1128, 0.7978846
      %v1133 = vmul.f32 %v1129, 0.7978846
      %v1134 = vtanh.pop %v1130
      %v1135 = vtanh.pop %v1131
      %v1136 = vtanh.pop %v1132
      %v1137 = vtanh.pop %v1133
      %v1138 = vadd.f32 %v1134, 1.0
      %v1139 = vadd.f32 %v1135, 1.0
      %v1140 = vadd.f32 %v1136, 1.0
      %v1141 = vadd.f32 %v1137, 1.0
      %v1142 = vmul.f32 %v1110, %v1138
      %v1143 = vmul.f32 %v1111, %v1139
      %v1144 = vmul.f32 %v1112, %v1140
      %v1145 = vmul.f32 %v1113, %v1141
      %v1146 = vld [vmem:[%s8] sm:$0xf]
      %v1147 = vpack.c.bf16 %v1144, %v1142
      %v1148 = vpack.c.bf16 %v1145, %v1143
      %v1149 = vld [vmem:[%s11] sm:$0xff]
      %1151 = vset.pattern.permute.xlu0 4
      %1152 = vperm.xlu0 %1151, %v1149
      %v1153 = vpop.permute.xlu0 %1152
      %vm1155 = vcmask 130048
      %v1157 = vsel %vm1155, %v1146, 0
      %1159 = vmatprep.subr.bf16.mxu0 0
      %1160 = vmatpush1.bf16.msra.mxu0 0
      %1161 = vmatprep.subr.bf16.mxu0 0
      %1162 = vmatpush1.bf16.msra.mxu0 0
      %1163 = vmatprep.subr.bf16.mxu0 0
      %1164 = vmatpush1.bf16.msra.mxu0 0
      %1165 = vmatprep.subr.bf16.mxu0 0
      %1166 = vmatpush1.bf16.msra.mxu0 0
      %1167 = vmatprep.subr.bf16.mxu0 0
      %1168 = vmatpush1.bf16.msra.mxu0 0
      %1169 = vmatprep.subr.bf16.mxu0 0
      %1170 = vmatpush1.bf16.msra.mxu0 0
      %1171 = vmatprep.subr.bf16.mxu0 0
      %1172 = vmatpush1.bf16.msra.mxu0 0
      %1173 = vmatprep.subr.bf16.mxu0 %v1148
      %1174 = vmatpush1.bf16.msra.mxu0 %v1147
      %1175 = vmatprep.subr.bf16.mxu0 0
      %1176 = vmatpush2.bf16.msra.mxu0 0
      %1177 = vmatprep.subr.bf16.mxu0 0
      %1178 = vmatpush2.bf16.msra.mxu0 0
      %1179 = vmatprep.subr.bf16.mxu0 0
      %1180 = vmatpush2.bf16.msra.mxu0 0
      %1181 = vmatprep.subr.bf16.mxu0 0
      %1182 = vmatpush2.bf16.msra.mxu0 0
      %1183 = vmatprep.subr.bf16.mxu0 0
      %1184 = vmatpush2.bf16.msra.mxu0 0
      %1185 = vmatprep.subr.bf16.mxu0 0
      %1186 = vmatpush2.bf16.msra.mxu0 0
      %1187 = vmatprep.subr.bf16.mxu0 0
      %1188 = vmatpush2.bf16.msra.mxu0 0
      %1189 = vmatprep.subr.bf16.mxu0 0
      %1190 = vmatpush2.bf16.msra.mxu0 0
      %1191 = vmatprep.mubr.bf16.mxu0 0
      %1192 = vmatmul.mubr.bf16.gmra.mxu0 %v1157
      %v1193 = vpop.f32.mrf.mxu0
      %v1194 = vadd.f32 %v1153, %v1193
      %v1195 = vpop.f32.mrf.mxu0
      %v1196 = vadd.f32 %v1153, %v1195
      %v1197 = vpop.f32.mrf.mxu0
      %v1198 = vpop.f32.mrf.mxu0
      %1199 = vdwg.mxu0
      %v1200 = vmul.f32 %v1194, 0.5
      %v1201 = vmul.f32 %v1196, 0.5
      %v1202 = vmul.f32 %v1194, 0.044715
      %v1203 = vmul.f32 %v1196, 0.044715
      %v1204 = vmul.f32 %v1202, %v1194
      %v1205 = vmul.f32 %v1203, %v1196
      %v1206 = vmul.f32 %v1204, %v1194
      %v1207 = vmul.f32 %v1205, %v1196
      %v1208 = vadd.f32 %v1194, %v1206
      %v1209 = vadd.f32 %v1196, %v1207
      %v1210 = vmul.f32 %v1208, 0.7978846
      %v1211 = vmul.f32 %v1209, 0.7978846
      %v1212 = vtanh.pop %v1210
      %v1213 = vtanh.pop %v1211
      %v1214 = vadd.f32 %v1212, 1.0
      %v1215 = vadd.f32 %v1213, 1.0
      %v1216 = vmul.f32 %v1200, %v1214
      %v1217 = vmul.f32 %v1201, %v1215
      %v1218 = vld [vmem:[%s9] sm:$0x3]
      %v1219 = vpack.c.bf16 %v1216, %v1216
      %v1220 = vpack.c.bf16 %v1217, %v1217
      %v1221 = vld [vmem:[%s11] sm:$0xf]
      %1223 = vset.pattern.permute.xlu0 5
      %1224 = vperm.xlu0 %1223, %v1221
      %v1225 = vpop.permute.xlu0 %1224
      %vm1227 = vcmask 64512
      %v1229 = vsel %vm1227, %v1218, 0
      %vm1231 = vcmask 1043456
      %v1233 = vsel %vm1231, %v1219, 0
      %v1236 = vsel %vm1231, %v1220, 0
      %1238 = vmatprep.subr.bf16.mxu0 0
      %1239 = vmatpush1.bf16.msra.mxu0 0
      %1240 = vmatprep.subr.bf16.mxu0 0
      %1241 = vmatpush1.bf16.msra.mxu0 0
      %1242 = vmatprep.subr.bf16.mxu0 0
      %1243 = vmatpush1.bf16.msra.mxu0 0
      %1244 = vmatprep.subr.bf16.mxu0 0
      %1245 = vmatpush1.bf16.msra.mxu0 0
      %1246 = vmatprep.subr.bf16.mxu0 0
      %1247 = vmatpush1.bf16.msra.mxu0 0
      %1248 = vmatprep.subr.bf16.mxu0 0
      %1249 = vmatpush1.bf16.msra.mxu0 0
      %1250 = vmatprep.subr.bf16.mxu0 0
      %1251 = vmatpush1.bf16.msra.mxu0 0
      %1252 = vmatprep.subr.bf16.mxu0 %v1236
      %1253 = vmatpush1.bf16.msra.mxu0 %v1233
      %1254 = vmatprep.subr.bf16.mxu0 0
      %1255 = vmatpush2.bf16.msra.mxu0 0
      %1256 = vmatprep.subr.bf16.mxu0 0
      %1257 = vmatpush2.bf16.msra.mxu0 0
      %1258 = vmatprep.subr.bf16.mxu0 0
      %1259 = vmatpush2.bf16.msra.mxu0 0
      %1260 = vmatprep.subr.bf16.mxu0 0
      %1261 = vmatpush2.bf16.msra.mxu0 0
      %1262 = vmatprep.subr.bf16.mxu0 0
      %1263 = vmatpush2.bf16.msra.mxu0 0
      %1264 = vmatprep.subr.bf16.mxu0 0
      %1265 = vmatpush2.bf16.msra.mxu0 0
      %1266 = vmatprep.subr.bf16.mxu0 0
      %1267 = vmatpush2.bf16.msra.mxu0 0
      %1268 = vmatprep.subr.bf16.mxu0 0
      %1269 = vmatpush2.bf16.msra.mxu0 0
      %1270 = vmatprep.mubr.bf16.mxu0 0
      %1271 = vmatmul.mubr.bf16.gmra.mxu0 %v1229
      %v1272 = vpop.f32.mrf.mxu0
      %v1273 = vadd.f32 %v1225, %v1272
      %v1274 = vpop.f32.mrf.mxu0
      %v1275 = vadd.f32 %v1225, %v1274
      %v1276 = vpop.f32.mrf.mxu0
      %v1277 = vpop.f32.mrf.mxu0
      %1278 = vdwg.mxu0
      %v1279 = vmul.f32 %v1273, 0.5
      %v1280 = vmul.f32 %v1275, 0.5
      %v1281 = vmul.f32 %v1273, 0.044715
      %v1282 = vmul.f32 %v1275, 0.044715
      %v1283 = vmul.f32 %v1281, %v1273
      %v1284 = vmul.f32 %v1282, %v1275
      %v1285 = vmul.f32 %v1283, %v1273
      %v1286 = vmul.f32 %v1284, %v1275
      %v1287 = vadd.f32 %v1273, %v1285
      %v1288 = vadd.f32 %v1275, %v1286
      %v1289 = vmul.f32 %v1287, 0.7978846
      %v1290 = vmul.f32 %v1288, 0.7978846
      %v1291 = vtanh.pop %v1289
      %v1292 = vtanh.pop %v1290
      %v1293 = vadd.f32 %v1291, 1.0
      %v1294 = vadd.f32 %v1292, 1.0
      %v1295 = vmul.f32 %v1279, %v1293
      %v1296 = vmul.f32 %v1280, %v1294
      %v1297 = vld [vmem:[%s10] sm:$0x1]
      %v1298 = vpack.c.bf16 %v1295, %v1295
      %v1299 = vpack.c.bf16 %v1296, %v1296
      %v1300 = vld [vmem:[%s12] sm:$0x3]
      %1302 = vset.pattern.permute.xlu0 0
      %1303 = vperm.xlu0 %1302, %v1300
      %v1304 = vpop.permute.xlu0 %1303
      %v1307 = vsel %vm607, %v1297, 0
      %v1310 = vsel %vm614, %v1298, 0
      %v1313 = vsel %vm614, %v1299, 0
      %1315 = vmatprep.subr.bf16.mxu0 0
      %1316 = vmatpush1.bf16.msra.mxu0 0
      %1317 = vmatprep.subr.bf16.mxu0 0
      %1318 = vmatpush1.bf16.msra.mxu0 0
      %1319 = vmatprep.subr.bf16.mxu0 0
      %1320 = vmatpush1.bf16.msra.mxu0 0
      %1321 = vmatprep.subr.bf16.mxu0 0
      %1322 = vmatpush1.bf16.msra.mxu0 0
      %1323 = vmatprep.subr.bf16.mxu0 0
      %1324 = vmatpush1.bf16.msra.mxu0 0
      %1325 = vmatprep.subr.bf16.mxu0 0
      %1326 = vmatpush1.bf16.msra.mxu0 0
      %1327 = vmatprep.subr.bf16.mxu0 0
      %1328 = vmatpush1.bf16.msra.mxu0 0
      %1329 = vmatprep.subr.bf16.mxu0 %v1313
      %1330 = vmatpush1.bf16.msra.mxu0 %v1310
      %1331 = vmatprep.subr.bf16.mxu0 0
      %1332 = vmatpush2.bf16.msra.mxu0 0
      %1333 = vmatprep.subr.bf16.mxu0 0
      %1334 = vmatpush2.bf16.msra.mxu0 0
      %1335 = vmatprep.subr.bf16.mxu0 0
      %1336 = vmatpush2.bf16.msra.mxu0 0
      %1337 = vmatprep.subr.bf16.mxu0 0
      %1338 = vmatpush2.bf16.msra.mxu0 0
      %1339 = vmatprep.subr.bf16.mxu0 0
      %1340 = vmatpush2.bf16.msra.mxu0 0
      %1341 = vmatprep.subr.bf16.mxu0 0
      %1342 = vmatpush2.bf16.msra.mxu0 0
      %1343 = vmatprep.subr.bf16.mxu0 0
      %1344 = vmatpush2.bf16.msra.mxu0 0
      %1345 = vmatprep.subr.bf16.mxu0 0
      %1346 = vmatpush2.bf16.msra.mxu0 0
      %1347 = vmatprep.mubr.bf16.mxu0 0
      %1348 = vmatmul.mubr.bf16.gmra.mxu0 %v1307
      %v1349 = vpop.f32.mrf.mxu0
      %v1350 = vadd.f32 %v1304, %v1349
      %v1351 = vpop.f32.mrf.mxu0
      %v1352 = vadd.f32 %v1304, %v1351
      %v1353 = vpop.f32.mrf.mxu0
      %v1354 = vpop.f32.mrf.mxu0
      %1355 = vdwg.mxu0
      %v1356 = vld [vmem:[%s546] sm:$0xf]
      %v1359 = vunpack.c.l.s4 1983009808
      %v1360 = vunpack.c.0.s8 %v1359
      %v1361 = vlaneseq
      %v1362 = vshrl.u32 %v1361, 7
      %v1363 = vsub.s32 %v1360, %v1362
      %v1364 = vrot.slane %v1356, %v1363
      %v1365 = vcombine.high %v1364, %v1364
      %v1368 = vadd.f32 %v1350, %v1364
      %v1369 = vadd.f32 %v1352, %v1365
      %v1370 = vadd.f32 %v1368, 1.0
      %v1371 = vadd.f32 %v1369, 1.0
      %v1372 = vmul.f32 %v1370, 8.0
      %v1373 = vmul.f32 %v1371, 8.0
      %v1374 = vsub.f32 %v1372, 0.5
      %v1375 = vsub.f32 %v1373, 0.5
      %v1376 = vmax.f32 %v1374, 0.0
      %v1377 = vmax.f32 %v1375, 0.0
      %v1378 = vmin.f32 %v1376, 15.0
      %v1379 = vmin.f32 %v1377, 15.0
      %v1380 = vfloor.f32 %v1378
      %v1381 = vfloor.f32 %v1379
      %v1382 = vsub.f32 %v1378, %v1380
      %v1383 = vsub.f32 %v1379, %v1381
      %v1384 = vcvt.f32.s32.to.zero.pseudo %v1380
      %v1385 = vcvt.f32.s32.to.zero.pseudo %v1381
      %v1386 = vadd.s32 %v1384, 1
      %v1387 = vadd.s32 %v1385, 1
      %vm1388 = vcmp.lt.s32.totalorder %v1386, 15
      %v1389 = vsel %vm1388, %v1386, 15
      %vm1390 = vcmp.lt.s32.totalorder %v1387, 15
      %v1391 = vsel %vm1390, %v1387, 15
      %v1392 = vlaneseq
      %v1393 = vshrl.u32 %v1392, 7
      %v1394 = vadd.s32 %v1393, 8
      %v1395 = vlaneseq
      %v1396 = vshrl.u32 %v1395, 7
      %v1397 = vsub.s32 0, %v1396
      %v1398 = vrot.slane %v1384, %v1397
      %v1399 = vlaneseq
      %v1400 = vshrl.u32 %v1399, 7
      %v1401 = vsub.s32 0, %v1400
      %v1402 = vrot.slane %v1385, %v1401
      %vm1403 = vcmp.eq.s32.totalorder %v1393, %v1398
      %vm1404 = vcmp.eq.s32.totalorder %v1393, %v1402
      %vm1405 = vcmp.eq.s32.totalorder %v1394, %v1398
      %vm1406 = vcmp.eq.s32.totalorder %v1394, %v1402
      %v1407 = vsub.f32 1.0, %v1382
      %v1408 = vsub.f32 1.0, %v1383
      %v1409 = vlaneseq
      %v1410 = vshrl.u32 %v1409, 7
      %v1411 = vsub.s32 0, %v1410
      %v1412 = vrot.slane %v1407, %v1411
      %v1413 = vlaneseq
      %v1414 = vshrl.u32 %v1413, 7
      %v1415 = vsub.s32 0, %v1414
      %v1416 = vrot.slane %v1408, %v1415
      %v1417 = vsel %vm1403, %v1412, 0.0
      %v1418 = vsel %vm1404, %v1416, 0.0
      %v1419 = vsel %vm1405, %v1412, 0.0
      %v1420 = vsel %vm1406, %v1416, 0.0
      %v1421 = vlaneseq
      %v1422 = vshrl.u32 %v1421, 7
      %v1423 = vsub.s32 0, %v1422
      %v1424 = vrot.slane %v1389, %v1423
      %v1425 = vlaneseq
      %v1426 = vshrl.u32 %v1425, 7
      %v1427 = vsub.s32 0, %v1426
      %v1428 = vrot.slane %v1391, %v1427
      %vm1429 = vcmp.eq.s32.totalorder %v1393, %v1424
      %vm1430 = vcmp.eq.s32.totalorder %v1393, %v1428
      %vm1431 = vcmp.eq.s32.totalorder %v1394, %v1424
      %vm1432 = vcmp.eq.s32.totalorder %v1394, %v1428
      %v1433 = vlaneseq
      %v1434 = vshrl.u32 %v1433, 7
      %v1435 = vsub.s32 0, %v1434
      %v1436 = vrot.slane %v1382, %v1435
      %v1437 = vlaneseq
      %v1438 = vshrl.u32 %v1437, 7
      %v1439 = vsub.s32 0, %v1438
      %v1440 = vrot.slane %v1383, %v1439
      %v1441 = vsel %vm1429, %v1436, 0.0
      %v1442 = vsel %vm1430, %v1440, 0.0
      %v1443 = vsel %vm1431, %v1436, 0.0
      %v1444 = vsel %vm1432, %v1440, 0.0
      %v1445 = vadd.f32 %v1417, %v1441
      %v1446 = vadd.f32 %v1418, %v1442
      %v1447 = vadd.f32 %v1419, %v1443
      %v1448 = vadd.f32 %v1420, %v1444
      %v1449 = vlaneseq
      %v1450 = vshrl.u32 %v1449, 7
      %v1451 = vsub.s32 1, %v1450
      %v1452 = vrot.slane %v1384, %v1451
      %v1453 = vlaneseq
      %v1454 = vshrl.u32 %v1453, 7
      %v1455 = vsub.s32 1, %v1454
      %v1456 = vrot.slane %v1385, %v1455
      %vm1457 = vcmp.eq.s32.totalorder %v1393, %v1452
      %vm1458 = vcmp.eq.s32.totalorder %v1393, %v1456
      %vm1459 = vcmp.eq.s32.totalorder %v1394, %v1452
      %vm1460 = vcmp.eq.s32.totalorder %v1394, %v1456
      %v1461 = vlaneseq
      %v1462 = vshrl.u32 %v1461, 7
      %v1463 = vsub.s32 1, %v1462
      %v1464 = vrot.slane %v1407, %v1463
      %v1465 = vlaneseq
      %v1466 = vshrl.u32 %v1465, 7
      %v1467 = vsub.s32 1, %v1466
      %v1468 = vrot.slane %v1408, %v1467
      %v1469 = vsel %vm1457, %v1464, 0.0
      %v1470 = vsel %vm1458, %v1468, 0.0
      %v1471 = vsel %vm1459, %v1464, 0.0
      %v1472 = vsel %vm1460, %v1468, 0.0
      %v1473 = vlaneseq
      %v1474 = vshrl.u32 %v1473, 7
      %v1475 = vsub.s32 1, %v1474
      %v1476 = vrot.slane %v1389, %v1475
      %v1477 = vlaneseq
      %v1478 = vshrl.u32 %v1477, 7
      %v1479 = vsub.s32 1, %v1478
      %v1480 = vrot.slane %v1391, %v1479
      %vm1481 = vcmp.eq.s32.totalorder %v1393, %v1476
      %vm1482 = vcmp.eq.s32.totalorder %v1393, %v1480
      %vm1483 = vcmp.eq.s32.totalorder %v1394, %v1476
      %vm1484 = vcmp.eq.s32.totalorder %v1394, %v1480
      %v1485 = vlaneseq
      %v1486 = vshrl.u32 %v1485, 7
      %v1487 = vsub.s32 1, %v1486
      %v1488 = vrot.slane %v1382, %v1487
      %v1489 = vlaneseq
      %v1490 = vshrl.u32 %v1489, 7
      %v1491 = vsub.s32 1, %v1490
      %v1492 = vrot.slane %v1383, %v1491
      %v1493 = vsel %vm1481, %v1488, 0.0
      %v1494 = vsel %vm1482, %v1492, 0.0
      %v1495 = vsel %vm1483, %v1488, 0.0
      %v1496 = vsel %vm1484, %v1492, 0.0
      %v1497 = vadd.f32 %v1469, %v1493
      %v1498 = vadd.f32 %v1470, %v1494
      %v1499 = vadd.f32 %v1471, %v1495
      %v1500 = vadd.f32 %v1472, %v1496
      %v1505 = vcombine.low %v1497, %v1498
      %v1506 = vcombine.high %v1497, %v1498
      %v1508 = vunpack.c.l.s4 1966171168
      %v1509 = vunpack.c.0.s8 %v1508
      %v1510 = vlaneseq
      %v1511 = vshrl.u32 %v1510, 7
      %v1512 = vsub.s32 %v1509, %v1511
      %v1513 = vrot.slane %v1505, %v1512
      %v1515 = vunpack.c.l.s4 1966171168
      %v1516 = vunpack.c.0.s8 %v1515
      %v1517 = vlaneseq
      %v1518 = vshrl.u32 %v1517, 7
      %v1519 = vsub.s32 %v1516, %v1518
      %v1520 = vrot.slane %v1506, %v1519
      %v1521 = vcombine.high %v1513, %v1513
      %v1522 = vcombine.high %v1520, %v1520
      %v1524 = vunpack.c.l.s4 1966171168
      %v1525 = vunpack.c.0.s8 %v1524
      %v1526 = vlaneseq
      %v1527 = vshrl.u32 %v1526, 7
      %v1528 = vsub.s32 %v1525, %v1527
      %v1529 = vrot.slane %v1513, %v1528
      %v1531 = vunpack.c.l.s4 1966171168
      %v1532 = vunpack.c.0.s8 %v1531
      %v1533 = vlaneseq
      %v1534 = vshrl.u32 %v1533, 7
      %v1535 = vsub.s32 %v1532, %v1534
      %v1536 = vrot.slane %v1520, %v1535
      %v1538 = vunpack.c.l.s4 1966171168
      %v1539 = vunpack.c.0.s8 %v1538
      %v1540 = vlaneseq
      %v1541 = vshrl.u32 %v1540, 7
      %v1542 = vsub.s32 %v1539, %v1541
      %v1543 = vrot.slane %v1521, %v1542
      %v1545 = vunpack.c.l.s4 1966171168
      %v1546 = vunpack.c.0.s8 %v1545
      %v1547 = vlaneseq
      %v1548 = vshrl.u32 %v1547, 7
      %v1549 = vsub.s32 %v1546, %v1548
      %v1550 = vrot.slane %v1522, %v1549
      %v1551 = vcombine.high %v1529, %v1529
      %v1552 = vcombine.high %v1536, %v1536
      %v1553 = vcombine.high %v1543, %v1543
      %v1554 = vcombine.high %v1550, %v1550
      %v1555 = vcombine.low %v1499, %v1500
      %v1556 = vcombine.high %v1499, %v1500
      %v1558 = vunpack.c.l.s4 1966171168
      %v1559 = vunpack.c.0.s8 %v1558
      %v1560 = vlaneseq
      %v1561 = vshrl.u32 %v1560, 7
      %v1562 = vsub.s32 %v1559, %v1561
      %v1563 = vrot.slane %v1555, %v1562
      %v1565 = vunpack.c.l.s4 1966171168
      %v1566 = vunpack.c.0.s8 %v1565
      %v1567 = vlaneseq
      %v1568 = vshrl.u32 %v1567, 7
      %v1569 = vsub.s32 %v1566, %v1568
      %v1570 = vrot.slane %v1556, %v1569
      %v1571 = vcombine.high %v1563, %v1563
      %v1572 = vcombine.high %v1570, %v1570
      %v1574 = vunpack.c.l.s4 1966171168
      %v1575 = vunpack.c.0.s8 %v1574
      %v1576 = vlaneseq
      %v1577 = vshrl.u32 %v1576, 7
      %v1578 = vsub.s32 %v1575, %v1577
      %v1579 = vrot.slane %v1563, %v1578
      %v1581 = vunpack.c.l.s4 1966171168
      %v1582 = vunpack.c.0.s8 %v1581
      %v1583 = vlaneseq
      %v1584 = vshrl.u32 %v1583, 7
      %v1585 = vsub.s32 %v1582, %v1584
      %v1586 = vrot.slane %v1570, %v1585
      %v1588 = vunpack.c.l.s4 1966171168
      %v1589 = vunpack.c.0.s8 %v1588
      %v1590 = vlaneseq
      %v1591 = vshrl.u32 %v1590, 7
      %v1592 = vsub.s32 %v1589, %v1591
      %v1593 = vrot.slane %v1571, %v1592
      %v1595 = vunpack.c.l.s4 1966171168
      %v1596 = vunpack.c.0.s8 %v1595
      %v1597 = vlaneseq
      %v1598 = vshrl.u32 %v1597, 7
      %v1599 = vsub.s32 %v1596, %v1598
      %v1600 = vrot.slane %v1572, %v1599
      %v1601 = vcombine.high %v1579, %v1579
      %v1602 = vcombine.high %v1586, %v1586
      %v1603 = vcombine.high %v1593, %v1593
      %v1604 = vcombine.high %v1600, %v1600
      %v1605 = vlaneseq
      %v1606 = vshrl.u32 %v1605, 7
      %v1607 = vsub.s32 0, %v1606
      %v1608 = vrot.slane %v1529, %v1607
      %v1609 = vlaneseq
      %v1610 = vshrl.u32 %v1609, 7
      %v1611 = vsub.s32 1, %v1610
      %v1612 = vrot.slane %v1529, %v1611
      %v1613 = vlaneseq
      %v1614 = vshrl.u32 %v1613, 7
      %v1615 = vsub.s32 0, %v1614
      %v1616 = vrot.slane %v1543, %v1615
      %v1617 = vlaneseq
      %v1618 = vshrl.u32 %v1617, 7
      %v1619 = vsub.s32 1, %v1618
      %v1620 = vrot.slane %v1543, %v1619
      %v1621 = vlaneseq
      %v1622 = vshrl.u32 %v1621, 7
      %v1623 = vsub.s32 0, %v1622
      %v1624 = vrot.slane %v1551, %v1623
      %v1625 = vlaneseq
      %v1626 = vshrl.u32 %v1625, 7
      %v1627 = vsub.s32 1, %v1626
      %v1628 = vrot.slane %v1551, %v1627
      %v1629 = vlaneseq
      %v1630 = vshrl.u32 %v1629, 7
      %v1631 = vsub.s32 0, %v1630
      %v1632 = vrot.slane %v1553, %v1631
      %v1633 = vlaneseq
      %v1634 = vshrl.u32 %v1633, 7
      %v1635 = vsub.s32 1, %v1634
      %v1636 = vrot.slane %v1553, %v1635
      %v1637 = vlaneseq
      %v1638 = vshrl.u32 %v1637, 7
      %v1639 = vsub.s32 0, %v1638
      %v1640 = vrot.slane %v1536, %v1639
      %v1641 = vlaneseq
      %v1642 = vshrl.u32 %v1641, 7
      %v1643 = vsub.s32 1, %v1642
      %v1644 = vrot.slane %v1536, %v1643
      %v1645 = vlaneseq
      %v1646 = vshrl.u32 %v1645, 7
      %v1647 = vsub.s32 0, %v1646
      %v1648 = vrot.slane %v1550, %v1647
      %v1649 = vlaneseq
      %v1650 = vshrl.u32 %v1649, 7
      %v1651 = vsub.s32 1, %v1650
      %v1652 = vrot.slane %v1550, %v1651
      %v1653 = vlaneseq
      %v1654 = vshrl.u32 %v1653, 7
      %v1655 = vsub.s32 0, %v1654
      %v1656 = vrot.slane %v1552, %v1655
      %v1657 = vlaneseq
      %v1658 = vshrl.u32 %v1657, 7
      %v1659 = vsub.s32 1, %v1658
      %v1660 = vrot.slane %v1552, %v1659
      %v1661 = vlaneseq
      %v1662 = vshrl.u32 %v1661, 7
      %v1663 = vsub.s32 0, %v1662
      %v1664 = vrot.slane %v1554, %v1663
      %v1665 = vlaneseq
      %v1666 = vshrl.u32 %v1665, 7
      %v1667 = vsub.s32 1, %v1666
      %v1668 = vrot.slane %v1554, %v1667
      %v1669 = vlaneseq
      %v1670 = vshrl.u32 %v1669, 7
      %v1671 = vsub.s32 0, %v1670
      %v1672 = vrot.slane %v1579, %v1671
      %v1673 = vlaneseq
      %v1674 = vshrl.u32 %v1673, 7
      %v1675 = vsub.s32 1, %v1674
      %v1676 = vrot.slane %v1579, %v1675
      %v1677 = vlaneseq
      %v1678 = vshrl.u32 %v1677, 7
      %v1679 = vsub.s32 0, %v1678
      %v1680 = vrot.slane %v1593, %v1679
      %v1681 = vlaneseq
      %v1682 = vshrl.u32 %v1681, 7
      %v1683 = vsub.s32 1, %v1682
      %v1684 = vrot.slane %v1593, %v1683
      %v1685 = vlaneseq
      %v1686 = vshrl.u32 %v1685, 7
      %v1687 = vsub.s32 0, %v1686
      %v1688 = vrot.slane %v1601, %v1687
      %v1689 = vlaneseq
      %v1690 = vshrl.u32 %v1689, 7
      %v1691 = vsub.s32 1, %v1690
      %v1692 = vrot.slane %v1601, %v1691
      %v1693 = vlaneseq
      %v1694 = vshrl.u32 %v1693, 7
      %v1695 = vsub.s32 0, %v1694
      %v1696 = vrot.slane %v1603, %v1695
      %v1697 = vlaneseq
      %v1698 = vshrl.u32 %v1697, 7
      %v1699 = vsub.s32 1, %v1698
      %v1700 = vrot.slane %v1603, %v1699
      %v1701 = vlaneseq
      %v1702 = vshrl.u32 %v1701, 7
      %v1703 = vsub.s32 0, %v1702
      %v1704 = vrot.slane %v1586, %v1703
      %v1705 = vlaneseq
      %v1706 = vshrl.u32 %v1705, 7
      %v1707 = vsub.s32 1, %v1706
      %v1708 = vrot.slane %v1586, %v1707
      %v1709 = vlaneseq
      %v1710 = vshrl.u32 %v1709, 7
      %v1711 = vsub.s32 0, %v1710
      %v1712 = vrot.slane %v1600, %v1711
      %v1713 = vlaneseq
      %v1714 = vshrl.u32 %v1713, 7
      %v1715 = vsub.s32 1, %v1714
      %v1716 = vrot.slane %v1600, %v1715
      %v1717 = vlaneseq
      %v1718 = vshrl.u32 %v1717, 7
      %v1719 = vsub.s32 0, %v1718
      %v1720 = vrot.slane %v1602, %v1719
      %v1721 = vlaneseq
      %v1722 = vshrl.u32 %v1721, 7
      %v1723 = vsub.s32 1, %v1722
      %v1724 = vrot.slane %v1602, %v1723
      %v1725 = vlaneseq
      %v1726 = vshrl.u32 %v1725, 7
      %v1727 = vsub.s32 0, %v1726
      %v1728 = vrot.slane %v1604, %v1727
      %v1729 = vlaneseq
      %v1730 = vshrl.u32 %v1729, 7
      %v1731 = vsub.s32 1, %v1730
      %v1732 = vrot.slane %v1604, %v1731
      %v1765 = vmul.f32 %v1608, %v1445
      %v1766 = vmul.f32 %v1612, %v1446
      %v1767 = vmul.f32 %v1608, %v1447
      %v1768 = vmul.f32 %v1612, %v1448
      %v1769 = vmul.f32 %v1616, %v1445
      %v1770 = vmul.f32 %v1620, %v1446
      %v1771 = vmul.f32 %v1616, %v1447
      %v1772 = vmul.f32 %v1620, %v1448
      %v1773 = vmul.f32 %v1624, %v1445
      %v1774 = vmul.f32 %v1628, %v1446
      %v1775 = vmul.f32 %v1624, %v1447
      %v1776 = vmul.f32 %v1628, %v1448
      %v1777 = vmul.f32 %v1632, %v1445
      %v1778 = vmul.f32 %v1636, %v1446
      %v1779 = vmul.f32 %v1632, %v1447
      %v1780 = vmul.f32 %v1636, %v1448
      %v1781 = vmul.f32 %v1640, %v1445
      %v1782 = vmul.f32 %v1644, %v1446
      %v1783 = vmul.f32 %v1640, %v1447
      %v1784 = vmul.f32 %v1644, %v1448
      %v1785 = vmul.f32 %v1648, %v1445
      %v1786 = vmul.f32 %v1652, %v1446
      %v1787 = vmul.f32 %v1648, %v1447
      %v1788 = vmul.f32 %v1652, %v1448
      %v1789 = vmul.f32 %v1656, %v1445
      %v1790 = vmul.f32 %v1660, %v1446
      %v1791 = vmul.f32 %v1656, %v1447
      %v1792 = vmul.f32 %v1660, %v1448
      %v1793 = vmul.f32 %v1664, %v1445
      %v1794 = vmul.f32 %v1668, %v1446
      %v1795 = vmul.f32 %v1664, %v1447
      %v1796 = vmul.f32 %v1668, %v1448
      %v1797 = vmul.f32 %v1672, %v1445
      %v1798 = vmul.f32 %v1676, %v1446
      %v1799 = vmul.f32 %v1672, %v1447
      %v1800 = vmul.f32 %v1676, %v1448
      %v1801 = vmul.f32 %v1680, %v1445
      %v1802 = vmul.f32 %v1684, %v1446
      %v1803 = vmul.f32 %v1680, %v1447
      %v1804 = vmul.f32 %v1684, %v1448
      %v1805 = vmul.f32 %v1688, %v1445
      %v1806 = vmul.f32 %v1692, %v1446
      %v1807 = vmul.f32 %v1688, %v1447
      %v1808 = vmul.f32 %v1692, %v1448
      %v1809 = vmul.f32 %v1696, %v1445
      %v1810 = vmul.f32 %v1700, %v1446
      %v1811 = vmul.f32 %v1696, %v1447
      %v1812 = vmul.f32 %v1700, %v1448
      %v1813 = vmul.f32 %v1704, %v1445
      %v1814 = vmul.f32 %v1708, %v1446
      %v1815 = vmul.f32 %v1704, %v1447
      %v1816 = vmul.f32 %v1708, %v1448
      %v1817 = vmul.f32 %v1712, %v1445
      %v1818 = vmul.f32 %v1716, %v1446
      %v1819 = vmul.f32 %v1712, %v1447
      %v1820 = vmul.f32 %v1716, %v1448
      %v1821 = vmul.f32 %v1720, %v1445
      %v1822 = vmul.f32 %v1724, %v1446
      %v1823 = vmul.f32 %v1720, %v1447
      %v1824 = vmul.f32 %v1724, %v1448
      %v1825 = vmul.f32 %v1728, %v1445
      %v1826 = vmul.f32 %v1732, %v1446
      %v1827 = vmul.f32 %v1728, %v1447
      %v1828 = vmul.f32 %v1732, %v1448
      %v1829 = vld [vmem:[%s531] sm:$0xf]
      %v1830 = vpack.c.bf16 %v1767, %v1765
      %v1831 = vpack.c.bf16 %v1768, %v1766
      %v1832 = vpack.c.bf16 %v1771, %v1769
      %v1833 = vpack.c.bf16 %v1772, %v1770
      %v1834 = vpack.c.bf16 %v1775, %v1773
      %v1835 = vpack.c.bf16 %v1776, %v1774
      %v1836 = vpack.c.bf16 %v1779, %v1777
      %v1837 = vpack.c.bf16 %v1780, %v1778
      %v1838 = vpack.c.bf16 %v1783, %v1781
      %v1839 = vpack.c.bf16 %v1784, %v1782
      %v1840 = vpack.c.bf16 %v1787, %v1785
      %v1841 = vpack.c.bf16 %v1788, %v1786
      %v1842 = vpack.c.bf16 %v1791, %v1789
      %v1843 = vpack.c.bf16 %v1792, %v1790
      %v1844 = vpack.c.bf16 %v1795, %v1793
      %v1845 = vpack.c.bf16 %v1796, %v1794
      %v1846 = vpack.c.bf16 %v1799, %v1797
      %v1847 = vpack.c.bf16 %v1800, %v1798
      %v1848 = vpack.c.bf16 %v1803, %v1801
      %v1849 = vpack.c.bf16 %v1804, %v1802
      %v1850 = vpack.c.bf16 %v1807, %v1805
      %v1851 = vpack.c.bf16 %v1808, %v1806
      %v1852 = vpack.c.bf16 %v1811, %v1809
      %v1853 = vpack.c.bf16 %v1812, %v1810
      %v1854 = vpack.c.bf16 %v1815, %v1813
      %v1855 = vpack.c.bf16 %v1816, %v1814
      %v1856 = vpack.c.bf16 %v1819, %v1817
      %v1857 = vpack.c.bf16 %v1820, %v1818
      %v1858 = vpack.c.bf16 %v1823, %v1821
      %v1859 = vpack.c.bf16 %v1824, %v1822
      %v1860 = vpack.c.bf16 %v1827, %v1825
      %v1861 = vpack.c.bf16 %v1828, %v1826
      %v1864 = vunpack.c.l.s4 1983009808
      %v1865 = vunpack.c.0.s8 %v1864
      %v1866 = vlaneseq
      %v1867 = vshrl.u32 %v1866, 7
      %v1868 = vsub.s32 %v1865, %v1867
      %v1869 = vrot.slane %v1829, %v1868
      %v1870 = vcombine.high %v1869, %v1869
      %1873 = vmatprep.subr.bf16.mxu0 %v1845
      %1874 = vmatpush1.bf16.msra.mxu0 %v1844
      %1875 = vmatprep.subr.bf16.mxu0 %v1843
      %1876 = vmatpush1.bf16.msra.mxu0 %v1842
      %1877 = vmatprep.subr.bf16.mxu0 %v1841
      %1878 = vmatpush1.bf16.msra.mxu0 %v1840
      %1879 = vmatprep.subr.bf16.mxu0 %v1839
      %1880 = vmatpush1.bf16.msra.mxu0 %v1838
      %1881 = vmatprep.subr.bf16.mxu0 %v1837
      %1882 = vmatpush1.bf16.msra.mxu0 %v1836
      %1883 = vmatprep.subr.bf16.mxu0 %v1835
      %1884 = vmatpush1.bf16.msra.mxu0 %v1834
      %1885 = vmatprep.subr.bf16.mxu0 %v1833
      %1886 = vmatpush1.bf16.msra.mxu0 %v1832
      %1887 = vmatprep.subr.bf16.mxu0 %v1831
      %1888 = vmatpush1.bf16.msra.mxu0 %v1830
      %1889 = vmatprep.subr.bf16.mxu0 %v1861
      %1890 = vmatpush2.bf16.msra.mxu0 %v1860
      %1891 = vmatprep.subr.bf16.mxu0 %v1859
      %1892 = vmatpush2.bf16.msra.mxu0 %v1858
      %1893 = vmatprep.subr.bf16.mxu0 %v1857
      %1894 = vmatpush2.bf16.msra.mxu0 %v1856
      %1895 = vmatprep.subr.bf16.mxu0 %v1855
      %1896 = vmatpush2.bf16.msra.mxu0 %v1854
      %1897 = vmatprep.subr.bf16.mxu0 %v1853
      %1898 = vmatpush2.bf16.msra.mxu0 %v1852
      %1899 = vmatprep.subr.bf16.mxu0 %v1851
      %1900 = vmatpush2.bf16.msra.mxu0 %v1850
      %1901 = vmatprep.subr.bf16.mxu0 %v1849
      %1902 = vmatpush2.bf16.msra.mxu0 %v1848
      %1903 = vmatprep.subr.bf16.mxu0 %v1847
      %1904 = vmatpush2.bf16.msra.mxu0 %v1846
      %1905 = vmatprep.mubr.bf16.mxu0 %v1870
      %1906 = vmatmul.mubr.bf16.gmra.mxu0 %v1869
      %v1907 = vpop.f32.mrf.mxu0
      %v1908 = vadd.f32 0.0, %v1907
      %v1909 = vpop.f32.mrf.mxu0
      %v1910 = vadd.f32 0.0, %v1909
      %v1911 = vpop.f32.mrf.mxu0
      %v1912 = vpop.f32.mrf.mxu0
      %1913 = vdwg.mxu0
      %v1916 = vcombine.low %v1908, %v1910
      %1918 = vst [vmem:[%s556] sm:$0xff] %v1916
      %s1919 = smul.u32 2, %s29
      %p1920 = scmp.lt.s32.totalorder %s28, 1
      %s1921 = scalar_select %p1920, %s28, 1
      %p1922 = scmp.lt.s32.totalorder %s1919, 1
      %s1923 = scalar_select %p1922, %s1919, 1
      %s1924 = smul.addr %s1921, 2
      %s1925 = sadd.s32 %s1923, %s1924
      %s1926 = smul.addr %s1925, 4
      %s1927 = scalar_lea.vmem %s13, %s1926
      // Predicated region
      $region73: #{pixelvit_stage_forward.3} parent=71 // pred_check
        %p1928 = pneg %p353
      $region74: #{pixelvit_stage_forward.3} parent=71 // pred_check_branch
        %1930 = sbr.rel (%p1928) target = $region76
      $region75: #{pixelvit_stage_forward.3} parent=71 // pred_region
        %s1931 = smul.u32 2, %s29
      $region76: #{pixelvit_stage_forward.3} parent=71 // pred_fallthru
        _
    $region72: #{pixelvit_stage_forward.3} parent=5 // pred_fallthru
      _
    %p1932 = scmp.le.s32.totalorder 2, %s19
    // Predicated region
    $region77: #{pixelvit_stage_forward.3} parent=5 // pred_check
      %p1933 = pneg %p1932
    $region78: #{pixelvit_stage_forward.3} parent=5 // pred_check_branch
      %1935 = sbr.rel (%p1933) target = $region80
    $region79: #{pixelvit_stage_forward.3} parent=5 // pred_region
      %s1936 = ssub.s32 %s19, 2
      // Predicated region
      $region81: #{pixelvit_stage_forward.3} parent=79 // pred_check
        %p1937 = pneg %p359
      $region82: #{pixelvit_stage_forward.3} parent=79 // pred_check_branch
        %1939 = sbr.rel (%p1937) target = $region84
      $region83: #{pixelvit_stage_forward.3} parent=79 // pred_region
        %s1940 = smul.u32 2, %s31
        %p1941 = scmp.lt.s32.totalorder %s30, 1
        %s1942 = scalar_select %p1941, %s30, 1
        %p1943 = scmp.lt.s32.totalorder %s1940, 1
        %s1944 = scalar_select %p1943, %s1940, 1
        %s1945 = smul.addr %s1942, 2
        %s1946 = sadd.s32 %s1944, %s1945
        %s1947 = smul.addr %s1946, 4
        %s1948 = scalar_lea.vmem %s13, %s1947
      $region84: #{pixelvit_stage_forward.3} parent=79 // pred_fallthru
        _
    $region80: #{pixelvit_stage_forward.3} parent=5 // pred_fallthru
      _
  $region6: #{pixelvit_stage_forward.3} parent=0 // loop_footer
    %s23 = sadd.s32 1, %s19
  $region7: #{pixelvit_stage_forward.3} parent=0 // loop_footer_branch
    %18 = sbr.rel target = $region3
  $region8: #{pixelvit_stage_forward.3} parent=0 // loop_exit
    _

</llo_original>
